<compile_context>
chip_gen: v7x
topology: tpu7x:2x2x1
jax: 0.10.0
libtpu: 0.0.40
codegen_flags: <defaults>
</compile_context>

<pallas_src>
import functools

import jax
import jax.numpy as jnp
from jax.experimental import pallas as pl
from jax.experimental.pallas import tpu as pltpu

_LANE = 128
_COMPUTE_DTYPE = jnp.bfloat16           # MXU feed dtype (f32 accumulation in-kernel)
_VMEM_LIMIT_BYTES = 32 * 1024 * 1024    # explicit scoped-VMEM limit (safe on v5e/v6e/v7x)
_TILE_VMEM_BUDGET = 12 * 1024 * 1024    # working-set budget used to size the HW tile


# ----------------------------- Pallas kernel ------------------------------ #

def _make_head_kernel(n_branches):
    """Fused concat + 1x1-conv + bias:  o = sum_i W_i @ x_i + b  (f32 accum)."""

    def kernel(*refs):
        x_refs = refs[:n_branches]                  # each (C_i, tHW), f32 or bf16
        w_refs = refs[n_branches:2 * n_branches]    # each (Cout, C_i), bf16
        b_ref = refs[2 * n_branches]                # (Cout, 1), f32
        o_ref = refs[2 * n_branches + 1]            # (Cout, tHW), f32

        acc = jnp.dot(w_refs[0][...],
                      x_refs[0][...].astype(_COMPUTE_DTYPE),
                      preferred_element_type=jnp.float32)
        for i in range(1, n_branches):
            acc = acc + jnp.dot(w_refs[i][...],
                                x_refs[i][...].astype(_COMPUTE_DTYPE),
                                preferred_element_type=jnp.float32)
        acc = acc + b_ref[...]                      # (Cout, 1) lane-broadcast
        o_ref[...] = acc.astype(o_ref.dtype)

    return kernel


def _pick_hw_tile(hw, branch_bytes_per_col, cout, fixed_param_bytes):
    """Largest multiple-of-128 lane tile that fits the VMEM working-set budget."""
    budget = max(2 * 1024 * 1024, _TILE_VMEM_BUDGET - fixed_param_bytes)
    # double-buffered inputs + double-buffered f32 output, per lane column
    per_lane = 2 * sum(branch_bytes_per_col) + 2 * cout * 4
    cap = max(_LANE, (budget // per_lane) // _LANE * _LANE)
    if hw < _LANE:
        return hw                                   # tiny spatial extent: full dim
    return min(cap, (hw // _LANE) * _LANE)


def _fused_concat_1x1_conv(xs_flat, ws, bias_col, hw_tile, single_buffer_params):
    """xs_flat: list of (N, C_i, HW) f32/bf16; ws: list of (Cout, C_i) bf16;
    bias_col: (Cout, 1) f32  ->  (N, Cout, HW) f32."""
    n_br = len(xs_flat)
    n_batch, _, hw = xs_flat[0].shape
    cout = ws[0].shape[0]
    grid = (n_batch, pl.cdiv(hw, hw_tile))

    def x_spec(c):
        return pl.BlockSpec((pl.Squeezed(), c, hw_tile), lambda n, j: (n, 0, j))

    def param_spec(shape):
        if single_buffer_params:
            # Grid-invariant operands: no need for a second VMEM buffer.
            return pl.BlockSpec(shape, lambda n, j: (0, 0),
                                pipeline_mode=pl.Buffered(1))
        return pl.BlockSpec(shape, lambda n, j: (0, 0))

    in_specs = [x_spec(x.shape[1]) for x in xs_flat]
    in_specs += [param_spec(w.shape) for w in ws]
    in_specs += [param_spec(bias_col.shape)]
    out_spec = pl.BlockSpec((pl.Squeezed(), cout, hw_tile), lambda n, j: (n, 0, j))

    # Advisory cost estimate so XLA schedules around the custom call sensibly.
    flops = 2 * n_batch * hw * cout * sum(int(w.shape[1]) for w in ws)
    bytes_accessed = sum(int(x.size) * jnp.dtype(x.dtype).itemsize for x in xs_flat)
    bytes_accessed += sum(int(w.size) * jnp.dtype(w.dtype).itemsize for w in ws)
    bytes_accessed += int(bias_col.size) * 4 + n_batch * cout * hw * 4

    return pl.pallas_call(
        _make_head_kernel(n_br),
        out_shape=jax.ShapeDtypeStruct((n_batch, cout, hw), jnp.float32),
        grid_spec=pltpu.PrefetchScalarGridSpec(
            num_scalar_prefetch=0,
            grid=grid,
            in_specs=in_specs,
            out_specs=out_spec,
        ),
        compiler_params=pltpu.CompilerParams(
            dimension_semantics=("parallel", "parallel"),
            vmem_limit_bytes=_VMEM_LIMIT_BYTES,
        ),
        cost_estimate=pl.CostEstimate(flops=flops, transcendentals=0,
                                      bytes_accessed=bytes_accessed),
    )(*xs_flat, *ws, bias_col)


# ------------------------------ JAX wrapper -------------------------------- #

@functools.partial(jax.jit, static_argnames=("single_buffer_params",))
def hrnetv2_representation_head_forward(inputs, weight, bias,
                                        single_buffer_params=True):
    """HRNetV2 representation head forward.

    inputs: list of NCHW float32 tensors (one per parallel branch/stream).
    weight: (Cout, sum(C_i), 1, 1) 1x1 mixing conv weight; concat channel order
            follows the order of `inputs`.
    bias:   (Cout,)
    returns (N, Cout, H_max, W_max) float32.
    """
    n_br = len(inputs)
    channels = [int(x.shape[1]) for x in inputs]
    spatial = [(int(x.shape[2]), int(x.shape[3])) for x in inputs]
    n_batch = int(inputs[0].shape[0])
    cout = int(weight.shape[0])
    assert int(weight.shape[1]) == sum(channels), \
        "1x1 mixing conv in_channels must equal sum of branch channels"

    # Highest-resolution branch defines the output spatial shape (np.argmax).
    top = max(range(n_br), key=lambda i: spatial[i][0] * spatial[i][1])
    out_h, out_w = spatial[top]
    hw = out_h * out_w

    # Per-branch column slices of the 1x1 mixing weight: the channel concat is
    # fused into the kernel as a sum of per-branch matmuls (never materialized).
    w2d = weight.reshape(cout, sum(channels)).astype(_COMPUTE_DTYPE)
    offs = [0]
    for c in channels:
        offs.append(offs[-1] + c)
    ws = [w2d[:, offs[i]:offs[i + 1]] for i in range(n_br)]
    bias_col = bias.reshape(cout, 1).astype(jnp.float32)

    # Upsample lower-resolution branches to the top resolution and flatten
    # NCHW -> (N, C, H*W) (free, row-major).  No NHWC round trips.
    # Resized branches: cast to bf16 in the resize epilogue (fused by XLA).
    # Top-resolution branches: fed as f32, cast to bf16 in-kernel (less HBM traffic).
    # TODO(synk): bilinear upsample stays in XLA (jax.image.resize).
    xs_flat = []
    for x, c, (h, w) in zip(inputs, channels, spatial):
        if (h, w) != (out_h, out_w):
            x = jax.image.resize(x, (n_batch, c, out_h, out_w), method="bilinear")
            x = x.astype(_COMPUTE_DTYPE)
        xs_flat.append(x.reshape(n_batch, c, hw))

    branch_bytes = [c * jnp.dtype(x.dtype).itemsize
                    for x, c in zip(xs_flat, channels)]
    fixed_param_bytes = 2 * (sum(int(w.size) * jnp.dtype(w.dtype).itemsize
                                 for w in ws)
                             + int(bias_col.size) * 4)
    hw_tile = _pick_hw_tile(hw, branch_bytes, cout, fixed_param_bytes)
    out_flat = _fused_concat_1x1_conv(xs_flat, ws, bias_col, hw_tile,
                                      single_buffer_params)
    return out_flat.reshape(n_batch, cout, out_h, out_w)


# -------------------------------- main ------------------------------------- #

if __name__ == "__main__":
    key = jax.random.PRNGKey(0)
    ks = jax.random.split(key, 5)

    # HRNetV2-style pyramid: 3 parallel branches, resolution halved per branch.
    N = 2
    branch_channels = [4, 8, 16]
    branch_spatial = [(16, 16), (8, 8), (4, 4)]
    Cout = 16
    Cin_total = sum(branch_channels)

    inputs = [
        jax.random.normal(k, (N, c, h, w), dtype=jnp.float32)
        for k, c, (h, w) in zip(ks[:3], branch_channels, branch_spatial)
    ]
    weight = 0.1 * jax.random.normal(ks[3], (Cout, Cin_total, 1, 1), jnp.float32)
    bias = 0.1 * jax.random.normal(ks[4], (Cout,), jnp.float32)

    try:
        out = hrnetv2_representation_head_forward(
            inputs, weight, bias, single_buffer_params=True)
        out = jax.block_until_ready(out)
    except Exception:
        # Fallback if this Pallas build rejects pipeline_mode=Buffered(1).
        out = hrnetv2_representation_head_forward(
            inputs, weight, bias, single_buffer_params=False)
        out = jax.block_until_ready(out)

    # -------- reference: upsample -> concat -> 1x1 conv (+bias), bf16 feed ---- #
    out_h, out_w = branch_spatial[0]
    ups = []
    for x in inputs:
        n, c, h, w = x.shape
        if (h, w) != (out_h, out_w):
            x = jax.image.resize(x, (n, c, out_h, out_w), method="bilinear")
        ups.append(x)
    cat = jnp.concatenate(ups, axis=1).astype(_COMPUTE_DTYPE)
    ref = jax.lax.conv_general_dilated(
        cat, weight.astype(_COMPUTE_DTYPE), window_strides=(1, 1),
        padding="VALID", dimension_numbers=("NCHW", "OIHW", "NCHW"),
        preferred_element_type=jnp.float32)
    ref = ref + bias.reshape(1, -1, 1, 1)

    ok = out.shape == (N, Cout, out_h, out_w)
    ok = ok and bool(jnp.allclose(out, ref, atol=1e-2, rtol=1e-2))

    if ok:
        print("KERNEL_OK")
    else:
        print("KERNEL_MISMATCH")
</pallas_src>

<mosaic_0001>
module attributes {stable_mosaic.version = 11 : i64} {
  func.func @kernel(%arg0: i32, %arg1: i32, %arg2: memref<1x4x256xf32, #tpu.memory_space<vmem>>, %arg3: memref<1x8x256xbf16, #tpu.memory_space<vmem>>, %arg4: memref<1x16x256xbf16, #tpu.memory_space<vmem>>, %arg5: memref<16x4xbf16, #tpu.memory_space<vmem>>, %arg6: memref<16x8xbf16, #tpu.memory_space<vmem>>, %arg7: memref<16x16xbf16, #tpu.memory_space<vmem>>, %arg8: memref<16x1xf32, #tpu.memory_space<vmem>>, %arg9: memref<1x16x256xf32, #tpu.memory_space<vmem>>) attributes {dimension_semantics = [#tpu.dimension_semantics<parallel>, #tpu.dimension_semantics<parallel>], iteration_bounds = array<i64: 2, 1>, scalar_prefetch = 0 : i64, scratch_operands = 0 : i64, tpu.core_type = #tpu.core_type<tc>, window_params = [{transform_indices = @transform_0, window_bounds = array<i64: 1, 4, 256>}, {transform_indices = @transform_1, window_bounds = array<i64: 1, 8, 256>}, {transform_indices = @transform_2, window_bounds = array<i64: 1, 16, 256>}, {pipeline_mode = #tpu.pipeline_mode<synchronous>, transform_indices = @transform_3, window_bounds = array<i64: 16, 4>}, {pipeline_mode = #tpu.pipeline_mode<synchronous>, transform_indices = @transform_4, window_bounds = array<i64: 16, 8>}, {pipeline_mode = #tpu.pipeline_mode<synchronous>, transform_indices = @transform_5, window_bounds = array<i64: 16, 16>}, {pipeline_mode = #tpu.pipeline_mode<synchronous>, transform_indices = @transform_6, window_bounds = array<i64: 16, 1>}, {transform_indices = @transform_7, window_bounds = array<i64: 1, 16, 256>}]} {
    %c0 = arith.constant 0 : index
    %c0_0 = arith.constant 0 : index
    %0 = vector.load %arg5[%c0, %c0_0] : memref<16x4xbf16, #tpu.memory_space<vmem>>, vector<16x4xbf16>
    %c0_1 = arith.constant 0 : index
    %c0_2 = arith.constant 0 : index
    %c0_3 = arith.constant 0 : index
    %1 = vector.load %arg2[%c0_1, %c0_2, %c0_3] : memref<1x4x256xf32, #tpu.memory_space<vmem>>, vector<1x4x256xf32>
    %2 = vector.shape_cast %1 : vector<1x4x256xf32> to vector<4x256xf32>
    %3 = arith.truncf %2 : vector<4x256xf32> to vector<4x256xbf16>
    %cst = arith.constant dense<0.000000e+00> : vector<16x256xf32>
    %4 = tpu.matmul %0, %3, %cst {dimension_numbers = #tpu.dot_dimension_numbers<[1], [0], [0], [1], [0, 0, 1, 1], [], []>} : vector<16x4xbf16>, vector<4x256xbf16>, vector<16x256xf32> -> vector<16x256xf32>
    %c0_4 = arith.constant 0 : index
    %c0_5 = arith.constant 0 : index
    %5 = vector.load %arg6[%c0_4, %c0_5] : memref<16x8xbf16, #tpu.memory_space<vmem>>, vector<16x8xbf16>
    %c0_6 = arith.constant 0 : index
    %c0_7 = arith.constant 0 : index
    %c0_8 = arith.constant 0 : index
    %6 = vector.load %arg3[%c0_6, %c0_7, %c0_8] : memref<1x8x256xbf16, #tpu.memory_space<vmem>>, vector<1x8x256xbf16>
    %7 = vector.shape_cast %6 : vector<1x8x256xbf16> to vector<8x256xbf16>
    %cst_9 = arith.constant dense<0.000000e+00> : vector<16x256xf32>
    %8 = tpu.matmul %5, %7, %cst_9 {dimension_numbers = #tpu.dot_dimension_numbers<[1], [0], [0], [1], [0, 0, 1, 1], [], []>} : vector<16x8xbf16>, vector<8x256xbf16>, vector<16x256xf32> -> vector<16x256xf32>
    %9 = arith.addf %4, %8 : vector<16x256xf32>
    %c0_10 = arith.constant 0 : index
    %c0_11 = arith.constant 0 : index
    %10 = vector.load %arg7[%c0_10, %c0_11] : memref<16x16xbf16, #tpu.memory_space<vmem>>, vector<16x16xbf16>
    %c0_12 = arith.constant 0 : index
    %c0_13 = arith.constant 0 : index
    %c0_14 = arith.constant 0 : index
    %11 = vector.load %arg4[%c0_12, %c0_13, %c0_14] : memref<1x16x256xbf16, #tpu.memory_space<vmem>>, vector<1x16x256xbf16>
    %12 = vector.shape_cast %11 : vector<1x16x256xbf16> to vector<16x256xbf16>
    %cst_15 = arith.constant dense<0.000000e+00> : vector<16x256xf32>
    %13 = tpu.matmul %10, %12, %cst_15 {dimension_numbers = #tpu.dot_dimension_numbers<[1], [0], [0], [1], [0, 0, 1, 1], [], []>} : vector<16x16xbf16>, vector<16x256xbf16>, vector<16x256xf32> -> vector<16x256xf32>
    %14 = arith.addf %9, %13 : vector<16x256xf32>
    %c0_16 = arith.constant 0 : index
    %c0_17 = arith.constant 0 : index
    %15 = vector.load %arg8[%c0_16, %c0_17] : memref<16x1xf32, #tpu.memory_space<vmem>>, vector<16x1xf32>
    %16 = vector.broadcast %15 : vector<16x1xf32> to vector<16x256xf32>
    %17 = arith.addf %14, %16 : vector<16x256xf32>
    %c0_18 = arith.constant 0 : index
    %c0_19 = arith.constant 0 : index
    %c0_20 = arith.constant 0 : index
    %18 = vector.load %arg9[%c0_18, %c0_19, %c0_20] : memref<1x16x256xf32, #tpu.memory_space<vmem>>, vector<1x16x256xf32>
    %19 = vector.shape_cast %18 : vector<1x16x256xf32> to vector<16x256xf32>
    %20 = vector.shape_cast %17 : vector<16x256xf32> to vector<1x16x256xf32>
    tpu.vector_store %arg9[%c0_18, %c0_19, %c0_20], %20 {strides = array<i32>} : memref<1x16x256xf32, #tpu.memory_space<vmem>>, vector<1x16x256xf32>,
    return
  }
  func.func @transform_0(%arg0: i32, %arg1: i32) -> (i32, i32, i32) {
    %c0_i32 = arith.constant 0 : i32
    %c0_i32_0 = arith.constant 0 : i32
    return %arg0, %c0_i32, %arg1 : i32, i32, i32
  }
  func.func @transform_1(%arg0: i32, %arg1: i32) -> (i32, i32, i32) {
    %c0_i32 = arith.constant 0 : i32
    %c0_i32_0 = arith.constant 0 : i32
    return %arg0, %c0_i32, %arg1 : i32, i32, i32
  }
  func.func @transform_2(%arg0: i32, %arg1: i32) -> (i32, i32, i32) {
    %c0_i32 = arith.constant 0 : i32
    %c0_i32_0 = arith.constant 0 : i32
    return %arg0, %c0_i32, %arg1 : i32, i32, i32
  }
  func.func @transform_3(%arg0: i32, %arg1: i32) -> (i32, i32) {
    %c0_i32 = arith.constant 0 : i32
    %c0_i32_0 = arith.constant 0 : i32
    %c0_i32_1 = arith.constant 0 : i32
    return %c0_i32, %c0_i32_0 : i32, i32
  }
  func.func @transform_4(%arg0: i32, %arg1: i32) -> (i32, i32) {
    %c0_i32 = arith.constant 0 : i32
    %c0_i32_0 = arith.constant 0 : i32
    %c0_i32_1 = arith.constant 0 : i32
    return %c0_i32, %c0_i32_0 : i32, i32
  }
  func.func @transform_5(%arg0: i32, %arg1: i32) -> (i32, i32) {
    %c0_i32 = arith.constant 0 : i32
    %c0_i32_0 = arith.constant 0 : i32
    %c0_i32_1 = arith.constant 0 : i32
    return %c0_i32, %c0_i32_0 : i32, i32
  }
  func.func @transform_6(%arg0: i32, %arg1: i32) -> (i32, i32) {
    %c0_i32 = arith.constant 0 : i32
    %c0_i32_0 = arith.constant 0 : i32
    %c0_i32_1 = arith.constant 0 : i32
    return %c0_i32, %c0_i32_0 : i32, i32
  }
  func.func @transform_7(%arg0: i32, %arg1: i32) -> (i32, i32, i32) {
    %c0_i32 = arith.constant 0 : i32
    %c0_i32_0 = arith.constant 0 : i32
    return %arg0, %c0_i32, %arg1 : i32, i32, i32
  }
}

module attributes {stable_mosaic.version = 11 : i64} {
  func.func @kernel(%arg0: i32, %arg1: i32, %arg2: memref<1x4x256xf32, #tpu.memory_space<vmem>>, %arg3: memref<1x8x256xbf16, #tpu.memory_space<vmem>>, %arg4: memref<1x16x256xbf16, #tpu.memory_space<vmem>>, %arg5: memref<16x4xbf16, #tpu.memory_space<vmem>>, %arg6: memref<16x8xbf16, #tpu.memory_space<vmem>>, %arg7: memref<16x16xbf16, #tpu.memory_space<vmem>>, %arg8: memref<16x1xf32, #tpu.memory_space<vmem>>, %arg9: memref<1x16x256xf32, #tpu.memory_space<vmem>>) attributes {dimension_semantics = [#tpu.dimension_semantics<parallel>, #tpu.dimension_semantics<parallel>], iteration_bounds = array<i64: 2, 1>, scalar_prefetch = 0 : i64, scratch_operands = 0 : i64, tpu.core_type = #tpu.core_type<tc>, window_params = [{transform_indices = @transform_0, window_bounds = array<i64: 1, 4, 256>}, {transform_indices = @transform_1, window_bounds = array<i64: 1, 8, 256>}, {transform_indices = @transform_2, window_bounds = array<i64: 1, 16, 256>}, {pipeline_mode = #tpu.pipeline_mode<synchronous>, transform_indices = @transform_3, window_bounds = array<i64: 16, 4>}, {pipeline_mode = #tpu.pipeline_mode<synchronous>, transform_indices = @transform_4, window_bounds = array<i64: 16, 8>}, {pipeline_mode = #tpu.pipeline_mode<synchronous>, transform_indices = @transform_5, window_bounds = array<i64: 16, 16>}, {pipeline_mode = #tpu.pipeline_mode<synchronous>, transform_indices = @transform_6, window_bounds = array<i64: 16, 1>}, {transform_indices = @transform_7, window_bounds = array<i64: 1, 16, 256>}]} {
    %c0 = arith.constant 0 : index
    %c0_0 = arith.constant 0 : index
    %0 = vector.load %arg5[%c0, %c0_0] : memref<16x4xbf16, #tpu.memory_space<vmem>>, vector<16x4xbf16>
    %c0_1 = arith.constant 0 : index
    %c0_2 = arith.constant 0 : index
    %c0_3 = arith.constant 0 : index
    %1 = vector.load %arg2[%c0_1, %c0_2, %c0_3] : memref<1x4x256xf32, #tpu.memory_space<vmem>>, vector<1x4x256xf32>
    %2 = vector.shape_cast %1 : vector<1x4x256xf32> to vector<4x256xf32>
    %3 = arith.truncf %2 : vector<4x256xf32> to vector<4x256xbf16>
    %cst = arith.constant dense<0.000000e+00> : vector<16x256xf32>
    %4 = tpu.matmul %0, %3, %cst {dimension_numbers = #tpu.dot_dimension_numbers<[1], [0], [0], [1], [0, 0, 1, 1], [], []>} : vector<16x4xbf16>, vector<4x256xbf16>, vector<16x256xf32> -> vector<16x256xf32>
    %c0_4 = arith.constant 0 : index
    %c0_5 = arith.constant 0 : index
    %5 = vector.load %arg6[%c0_4, %c0_5] : memref<16x8xbf16, #tpu.memory_space<vmem>>, vector<16x8xbf16>
    %c0_6 = arith.constant 0 : index
    %c0_7 = arith.constant 0 : index
    %c0_8 = arith.constant 0 : index
    %6 = vector.load %arg3[%c0_6, %c0_7, %c0_8] : memref<1x8x256xbf16, #tpu.memory_space<vmem>>, vector<1x8x256xbf16>
    %7 = vector.shape_cast %6 : vector<1x8x256xbf16> to vector<8x256xbf16>
    %cst_9 = arith.constant dense<0.000000e+00> : vector<16x256xf32>
    %8 = tpu.matmul %5, %7, %cst_9 {dimension_numbers = #tpu.dot_dimension_numbers<[1], [0], [0], [1], [0, 0, 1, 1], [], []>} : vector<16x8xbf16>, vector<8x256xbf16>, vector<16x256xf32> -> vector<16x256xf32>
    %9 = arith.addf %4, %8 : vector<16x256xf32>
    %c0_10 = arith.constant 0 : index
    %c0_11 = arith.constant 0 : index
    %10 = vector.load %arg7[%c0_10, %c0_11] : memref<16x16xbf16, #tpu.memory_space<vmem>>, vector<16x16xbf16>
    %c0_12 = arith.constant 0 : index
    %c0_13 = arith.constant 0 : index
    %c0_14 = arith.constant 0 : index
    %11 = vector.load %arg4[%c0_12, %c0_13, %c0_14] : memref<1x16x256xbf16, #tpu.memory_space<vmem>>, vector<1x16x256xbf16>
    %12 = vector.shape_cast %11 : vector<1x16x256xbf16> to vector<16x256xbf16>
    %cst_15 = arith.constant dense<0.000000e+00> : vector<16x256xf32>
    %13 = tpu.matmul %10, %12, %cst_15 {dimension_numbers = #tpu.dot_dimension_numbers<[1], [0], [0], [1], [0, 0, 1, 1], [], []>} : vector<16x16xbf16>, vector<16x256xbf16>, vector<16x256xf32> -> vector<16x256xf32>
    %14 = arith.addf %9, %13 : vector<16x256xf32>
    %c0_16 = arith.constant 0 : index
    %c0_17 = arith.constant 0 : index
    %15 = vector.load %arg8[%c0_16, %c0_17] : memref<16x1xf32, #tpu.memory_space<vmem>>, vector<16x1xf32>
    %16 = vector.broadcast %15 : vector<16x1xf32> to vector<16x256xf32>
    %17 = arith.addf %14, %16 : vector<16x256xf32>
    %c0_18 = arith.constant 0 : index
    %c0_19 = arith.constant 0 : index
    %c0_20 = arith.constant 0 : index
    %18 = vector.load %arg9[%c0_18, %c0_19, %c0_20] : memref<1x16x256xf32, #tpu.memory_space<vmem>>, vector<1x16x256xf32>
    %19 = vector.shape_cast %18 : vector<1x16x256xf32> to vector<16x256xf32>
    %20 = vector.shape_cast %17 : vector<16x256xf32> to vector<1x16x256xf32>
    tpu.vector_store %arg9[%c0_18, %c0_19, %c0_20], %20 {strides = array<i32>} : memref<1x16x256xf32, #tpu.memory_space<vmem>>, vector<1x16x256xf32>,
    return
  }
  func.func @transform_0(%arg0: i32, %arg1: i32) -> (i32, i32, i32) {
    %c0_i32 = arith.constant 0 : i32
    %c0_i32_0 = arith.constant 0 : i32
    return %arg0, %c0_i32, %arg1 : i32, i32, i32
  }
  func.func @transform_1(%arg0: i32, %arg1: i32) -> (i32, i32, i32) {
    %c0_i32 = arith.constant 0 : i32
    %c0_i32_0 = arith.constant 0 : i32
    return %arg0, %c0_i32, %arg1 : i32, i32, i32
  }
  func.func @transform_2(%arg0: i32, %arg1: i32) -> (i32, i32, i32) {
    %c0_i32 = arith.constant 0 : i32
    %c0_i32_0 = arith.constant 0 : i32
    return %arg0, %c0_i32, %arg1 : i32, i32, i32
  }
  func.func @transform_3(%arg0: i32, %arg1: i32) -> (i32, i32) {
    %c0_i32 = arith.constant 0 : i32
    %c0_i32_0 = arith.constant 0 : i32
    %c0_i32_1 = arith.constant 0 : i32
    return %c0_i32, %c0_i32_0 : i32, i32
  }
  func.func @transform_4(%arg0: i32, %arg1: i32) -> (i32, i32) {
    %c0_i32 = arith.constant 0 : i32
    %c0_i32_0 = arith.constant 0 : i32
    %c0_i32_1 = arith.constant 0 : i32
    return %c0_i32, %c0_i32_0 : i32, i32
  }
  func.func @transform_5(%arg0: i32, %arg1: i32) -> (i32, i32) {
    %c0_i32 = arith.constant 0 : i32
    %c0_i32_0 = arith.constant 0 : i32
    %c0_i32_1 = arith.constant 0 : i32
    return %c0_i32, %c0_i32_0 : i32, i32
  }
  func.func @transform_6(%arg0: i32, %arg1: i32) -> (i32, i32) {
    %c0_i32 = arith.constant 0 : i32
    %c0_i32_0 = arith.constant 0 : i32
    %c0_i32_1 = arith.constant 0 : i32
    return %c0_i32, %c0_i32_0 : i32, i32
  }
  func.func @transform_7(%arg0: i32, %arg1: i32) -> (i32, i32, i32) {
    %c0_i32 = arith.constant 0 : i32
    %c0_i32_0 = arith.constant 0 : i32
    return %arg0, %c0_i32, %arg1 : i32, i32, i32
  }
}

</mosaic_0001>

<llo_original>
// kernel: hrnetv2_representation_head_forward.1
$region0: #{hrnetv2_representation_head_forward.1}
  #allocation0 [shape = 'u32[]', space=smem, size = 0x4, offset = 0x4, fixed_abs, tag = 'smem constant byte address 0x4 - core index']
  #allocation1 [shape = 'u32[144,128]{1,0:T(1,128)}', space=vmem, size = 0x12000, scoped, tag = 'internal scratch']
  %s0 = inlined_call_operand.vmem [shape: f32[2,4,256], index: 0, kind: input, shape index: {}]
  %s1 = inlined_call_operand.vmem [shape: bf16[2,8,256], index: 1, kind: input, shape index: {}]
  %s2 = inlined_call_operand.vmem [shape: bf16[2,16,256], index: 2, kind: input, shape index: {}]
  %s3 = inlined_call_operand.vmem [shape: bf16[16,4], index: 3, kind: input, shape index: {}]
  %s4 = inlined_call_operand.vmem [shape: bf16[16,8], index: 4, kind: input, shape index: {}]
  %s5 = inlined_call_operand.vmem [shape: bf16[16,16], index: 5, kind: input, shape index: {}]
  %s6 = inlined_call_operand.vmem [shape: f32[16,1], index: 6, kind: input, shape index: {}]
  %s7 = inlined_call_operand.vmem [shape: f32[2,16,256], index: 7, kind: output, shape index: {}]
  %s8 = sld [smem:[#allocation0]]
  $region61: #{hrnetv2_representation_head_forward.1} parent=0
    _
  %s10 = ssub.s32 1, %s8
  %s11 = scalar_select 0, %s10, %s8
  loop: start=0, step=1, limit=4
  $region2: #{hrnetv2_representation_head_forward.1} parent=0 // loop_pre_header
    _
  $region3: #{hrnetv2_representation_head_forward.1} parent=0 // loop_header
    %s13 = sphi 0, %s17
    %p14 = scmp.ge.s32.totalorder %s13, 4
    %s20 = sphi 0, %s32
    %s21 = sphi 0, %s28
    %s22 = sphi 0, %s20
    %s23 = sphi 0, %s21
    %s24 = sphi 0, %s22
    %s25 = sphi 0, %s23
    %s37 = sphi 0, %s39
    %s40 = sphi 0, %s37
    %s41 = sphi 0, %s40
    %s57 = sphi 0, %s41
    %s65 = sphi 0, %s67
    %s68 = sphi 0, %s65
    %s69 = sphi 0, %s68
    %s85 = sphi 0, %s69
    %s93 = sphi 0, %s95
    %s96 = sphi 0, %s93
    %s97 = sphi 0, %s96
    %s113 = sphi 0, %s97
    %s117 = sphi 0, %s117
    %s119 = sphi 0, %s117
    %s120 = sphi 0, %s119
    %s134 = sphi 0, %s120
    %s138 = sphi 0, %s138
    %s140 = sphi 0, %s138
    %s141 = sphi 0, %s140
    %s155 = sphi 0, %s141
    %s159 = sphi 0, %s159
    %s161 = sphi 0, %s159
    %s162 = sphi 0, %s161
    %s176 = sphi 0, %s162
    %s180 = sphi 0, %s180
    %s182 = sphi 0, %s180
    %s183 = sphi 0, %s182
    %s197 = sphi 0, %s183
    %s205 = sphi 0, %s207
    %s208 = sphi 0, %s205
    %s209 = sphi 0, %s208
    %s225 = sphi 0, %s209
  $region4: #{hrnetv2_representation_head_forward.1} parent=0 // loop_header_branch
    %16 = sbr.rel (%p14) target = $region8
  $region5: #{hrnetv2_representation_head_forward.1} parent=0 // loop_body
    %s18 = ssub.s32 %s13, 1
    %s19 = ssub.s32 %s13, 2
    %s26 = sadd.s32 1, %s21
    %p27 = scmp.ge.s32.totalorder %s26, 1
    %s28 = scalar_select %p27, 0, %s26
    %s29 = sadd.s32 1, %s20
    %s30 = scalar_select %p27, %s29, %s20
    %p31 = scmp.ge.s32.totalorder %s30, 2
    %s32 = scalar_select %p31, 0, %s30
    %s33 = ssub.s32 %s20, %s32
    %s34 = ssub.s32 %s21, %s28
    %s35 = sor.u32 %s33, %s34
    %p36 = scmp.eq.s32.totalorder %s35, 0
    %s38 = sadd.s32 %s37, 1
    %s39 = scalar_select %p36, %s37, %s38
    %p42 = pneg %p36
    %p43 = scmp.eq.s32.totalorder %s13, 1
    %p44 = por %p42, %p43
    %p45 = scmp.ne.s32.totalorder %s37, %s40
    %p46 = scmp.eq.s32.totalorder %s13, 0
    %p47 = por %p45, %p46
    %p48 = scmp.ne.s32.totalorder %s37, %s40
    %p49 = scmp.eq.s32.totalorder %s18, 1
    %p50 = por %p48, %p49
    %p51 = scmp.ne.s32.totalorder %s40, %s41
    %p52 = scmp.eq.s32.totalorder %s18, 0
    %p53 = por %p51, %p52
    %p54 = scmp.ne.s32.totalorder %s40, %s41
    %p55 = scmp.eq.s32.totalorder %s19, 1
    %p56 = por %p54, %p55
    %p58 = scmp.ne.s32.totalorder %s41, %s57
    %p59 = scmp.eq.s32.totalorder %s19, 0
    %p60 = por %p58, %p59
    %s61 = ssub.s32 %s20, %s32
    %s62 = ssub.s32 %s21, %s28
    %s63 = sor.u32 %s61, %s62
    %p64 = scmp.eq.s32.totalorder %s63, 0
    %s66 = sadd.s32 %s65, 1
    %s67 = scalar_select %p64, %s65, %s66
    %p70 = pneg %p64
    %p71 = scmp.eq.s32.totalorder %s13, 1
    %p72 = por %p70, %p71
    %p73 = scmp.ne.s32.totalorder %s65, %s68
    %p74 = scmp.eq.s32.totalorder %s13, 0
    %p75 = por %p73, %p74
    %p76 = scmp.ne.s32.totalorder %s65, %s68
    %p77 = scmp.eq.s32.totalorder %s18, 1
    %p78 = por %p76, %p77
    %p79 = scmp.ne.s32.totalorder %s68, %s69
    %p80 = scmp.eq.s32.totalorder %s18, 0
    %p81 = por %p79, %p80
    %p82 = scmp.ne.s32.totalorder %s68, %s69
    %p83 = scmp.eq.s32.totalorder %s19, 1
    %p84 = por %p82, %p83
    %p86 = scmp.ne.s32.totalorder %s69, %s85
    %p87 = scmp.eq.s32.totalorder %s19, 0
    %p88 = por %p86, %p87
    %s89 = ssub.s32 %s20, %s32
    %s90 = ssub.s32 %s21, %s28
    %s91 = sor.u32 %s89, %s90
    %p92 = scmp.eq.s32.totalorder %s91, 0
    %s94 = sadd.s32 %s93, 1
    %s95 = scalar_select %p92, %s93, %s94
    %p98 = pneg %p92
    %p99 = scmp.eq.s32.totalorder %s13, 1
    %p100 = por %p98, %p99
    %p101 = scmp.ne.s32.totalorder %s93, %s96
    %p102 = scmp.eq.s32.totalorder %s13, 0
    %p103 = por %p101, %p102
    %p104 = scmp.ne.s32.totalorder %s93, %s96
    %p105 = scmp.eq.s32.totalorder %s18, 1
    %p106 = por %p104, %p105
    %p107 = scmp.ne.s32.totalorder %s96, %s97
    %p108 = scmp.eq.s32.totalorder %s18, 0
    %p109 = por %p107, %p108
    %p110 = scmp.ne.s32.totalorder %s96, %s97
    %p111 = scmp.eq.s32.totalorder %s19, 1
    %p112 = por %p110, %p111
    %p114 = scmp.ne.s32.totalorder %s97, %s113
    %p115 = scmp.eq.s32.totalorder %s19, 0
    %p116 = por %p114, %p115
    %s118 = sadd.s32 %s117, 1
    %p121 = scmp.eq.s32.totalorder %s13, 1
    %p122 = scmp.ne.s32.totalorder %s117, %s119
    %p123 = scmp.eq.s32.totalorder %s13, 0
    %p124 = por %p122, %p123
    %p125 = scmp.ne.s32.totalorder %s117, %s119
    %p126 = scmp.eq.s32.totalorder %s18, 1
    %p127 = por %p125, %p126
    %p128 = scmp.ne.s32.totalorder %s119, %s120
    %p129 = scmp.eq.s32.totalorder %s18, 0
    %p130 = por %p128, %p129
    %p131 = scmp.ne.s32.totalorder %s119, %s120
    %p132 = scmp.eq.s32.totalorder %s19, 1
    %p133 = por %p131, %p132
    %p135 = scmp.ne.s32.totalorder %s120, %s134
    %p136 = scmp.eq.s32.totalorder %s19, 0
    %p137 = por %p135, %p136
    %s139 = sadd.s32 %s138, 1
    %p142 = scmp.eq.s32.totalorder %s13, 1
    %p143 = scmp.ne.s32.totalorder %s138, %s140
    %p144 = scmp.eq.s32.totalorder %s13, 0
    %p145 = por %p143, %p144
    %p146 = scmp.ne.s32.totalorder %s138, %s140
    %p147 = scmp.eq.s32.totalorder %s18, 1
    %p148 = por %p146, %p147
    %p149 = scmp.ne.s32.totalorder %s140, %s141
    %p150 = scmp.eq.s32.totalorder %s18, 0
    %p151 = por %p149, %p150
    %p152 = scmp.ne.s32.totalorder %s140, %s141
    %p153 = scmp.eq.s32.totalorder %s19, 1
    %p154 = por %p152, %p153
    %p156 = scmp.ne.s32.totalorder %s141, %s155
    %p157 = scmp.eq.s32.totalorder %s19, 0
    %p158 = por %p156, %p157
    %s160 = sadd.s32 %s159, 1
    %p163 = scmp.eq.s32.totalorder %s13, 1
    %p164 = scmp.ne.s32.totalorder %s159, %s161
    %p165 = scmp.eq.s32.totalorder %s13, 0
    %p166 = por %p164, %p165
    %p167 = scmp.ne.s32.totalorder %s159, %s161
    %p168 = scmp.eq.s32.totalorder %s18, 1
    %p169 = por %p167, %p168
    %p170 = scmp.ne.s32.totalorder %s161, %s162
    %p171 = scmp.eq.s32.totalorder %s18, 0
    %p172 = por %p170, %p171
    %p173 = scmp.ne.s32.totalorder %s161, %s162
    %p174 = scmp.eq.s32.totalorder %s19, 1
    %p175 = por %p173, %p174
    %p177 = scmp.ne.s32.totalorder %s162, %s176
    %p178 = scmp.eq.s32.totalorder %s19, 0
    %p179 = por %p177, %p178
    %s181 = sadd.s32 %s180, 1
    %p184 = scmp.eq.s32.totalorder %s13, 1
    %p185 = scmp.ne.s32.totalorder %s180, %s182
    %p186 = scmp.eq.s32.totalorder %s13, 0
    %p187 = por %p185, %p186
    %p188 = scmp.ne.s32.totalorder %s180, %s182
    %p189 = scmp.eq.s32.totalorder %s18, 1
    %p190 = por %p188, %p189
    %p191 = scmp.ne.s32.totalorder %s182, %s183
    %p192 = scmp.eq.s32.totalorder %s18, 0
    %p193 = por %p191, %p192
    %p194 = scmp.ne.s32.totalorder %s182, %s183
    %p195 = scmp.eq.s32.totalorder %s19, 1
    %p196 = por %p194, %p195
    %p198 = scmp.ne.s32.totalorder %s183, %s197
    %p199 = scmp.eq.s32.totalorder %s19, 0
    %p200 = por %p198, %p199
    %s201 = ssub.s32 %s20, %s32
    %s202 = ssub.s32 %s21, %s28
    %s203 = sor.u32 %s201, %s202
    %p204 = scmp.eq.s32.totalorder %s203, 0
    %s206 = sadd.s32 %s205, 1
    %s207 = scalar_select %p204, %s205, %s206
    %p210 = pneg %p204
    %p211 = scmp.eq.s32.totalorder %s13, 1
    %p212 = por %p210, %p211
    %p213 = scmp.ne.s32.totalorder %s205, %s208
    %p214 = scmp.eq.s32.totalorder %s13, 0
    %p215 = por %p213, %p214
    %p216 = scmp.ne.s32.totalorder %s205, %s208
    %p217 = scmp.eq.s32.totalorder %s18, 1
    %p218 = por %p216, %p217
    %p219 = scmp.ne.s32.totalorder %s208, %s209
    %p220 = scmp.eq.s32.totalorder %s18, 0
    %p221 = por %p219, %p220
    %p222 = scmp.ne.s32.totalorder %s208, %s209
    %p223 = scmp.eq.s32.totalorder %s19, 1
    %p224 = por %p222, %p223
    %p226 = scmp.ne.s32.totalorder %s209, %s225
    %p227 = scmp.eq.s32.totalorder %s19, 0
    %p228 = por %p226, %p227
    %p229 = scmp.le.s32.totalorder 1, %s13
    %p230 = scmp.lt.s32.totalorder %s13, 3
    %p231 = pnand %p229, %p230
    %p232 = pneg %p231
    // Predicated region
    $region9: #{hrnetv2_representation_head_forward.1} parent=5 // pred_check
      _
    $region10: #{hrnetv2_representation_head_forward.1} parent=5 // pred_check_branch
      %234 = sbr.rel (%p231) target = $region12
    $region11: #{hrnetv2_representation_head_forward.1} parent=5 // pred_region
      %s235 = ssub.s32 %s13, 1
      // Predicated region
      $region13: #{hrnetv2_representation_head_forward.1} parent=11 // pred_check
        %p236 = pneg %p130
      $region14: #{hrnetv2_representation_head_forward.1} parent=11 // pred_check_branch
        %238 = sbr.rel (%p236) target = $region16
      $region15: #{hrnetv2_representation_head_forward.1} parent=11 // pred_region
        _
      $region16: #{hrnetv2_representation_head_forward.1} parent=11 // pred_fallthru
        _
      // Predicated region
      $region17: #{hrnetv2_representation_head_forward.1} parent=11 // pred_check
        %p239 = pneg %p151
      $region18: #{hrnetv2_representation_head_forward.1} parent=11 // pred_check_branch
        %241 = sbr.rel (%p239) target = $region20
      $region19: #{hrnetv2_representation_head_forward.1} parent=11 // pred_region
        _
      $region20: #{hrnetv2_representation_head_forward.1} parent=11 // pred_fallthru
        _
      // Predicated region
      $region21: #{hrnetv2_representation_head_forward.1} parent=11 // pred_check
        %p242 = pneg %p172
      $region22: #{hrnetv2_representation_head_forward.1} parent=11 // pred_check_branch
        %244 = sbr.rel (%p242) target = $region24
      $region23: #{hrnetv2_representation_head_forward.1} parent=11 // pred_region
        _
      $region24: #{hrnetv2_representation_head_forward.1} parent=11 // pred_fallthru
        _
      // Predicated region
      $region25: #{hrnetv2_representation_head_forward.1} parent=11 // pred_check
        %p245 = pneg %p193
      $region26: #{hrnetv2_representation_head_forward.1} parent=11 // pred_check_branch
        %247 = sbr.rel (%p245) target = $region28
      $region27: #{hrnetv2_representation_head_forward.1} parent=11 // pred_region
        _
      $region28: #{hrnetv2_representation_head_forward.1} parent=11 // pred_fallthru
        _
    $region12: #{hrnetv2_representation_head_forward.1} parent=5 // pred_fallthru
      _
    %p248 = scmp.lt.s32.totalorder %s13, 2
    // Predicated region
    $region29: #{hrnetv2_representation_head_forward.1} parent=5 // pred_check
      %p249 = pneg %p248
    $region30: #{hrnetv2_representation_head_forward.1} parent=5 // pred_check_branch
      %251 = sbr.rel (%p249) target = $region32
    $region31: #{hrnetv2_representation_head_forward.1} parent=5 // pred_region
      // Predicated region
      $region33: #{hrnetv2_representation_head_forward.1} parent=31 // pred_check
        %p252 = pneg %p47
      $region34: #{hrnetv2_representation_head_forward.1} parent=31 // pred_check_branch
        %254 = sbr.rel (%p252) target = $region36
      $region35: #{hrnetv2_representation_head_forward.1} parent=31 // pred_region
        %s255 = smul.u32 2, %s21
        %p256 = scmp.lt.s32.totalorder %s20, 1
        %s257 = scalar_select %p256, %s20, 1
        %p258 = scmp.lt.s32.totalorder %s255, 1
        %s259 = scalar_select %p258, %s255, 1
        %s260 = smul.addr %s257, 2
        %s261 = sadd.s32 %s259, %s260
        %s262 = smul.addr %s261, 4
        %s263 = scalar_lea.vmem %s0, %s262
        %s264 = smul.u32 2, %s21
      $region36: #{hrnetv2_representation_head_forward.1} parent=31 // pred_fallthru
        _
      // Predicated region
      $region37: #{hrnetv2_representation_head_forward.1} parent=31 // pred_check
        %p265 = pneg %p75
      $region38: #{hrnetv2_representation_head_forward.1} parent=31 // pred_check_branch
        %267 = sbr.rel (%p265) target = $region40
      $region39: #{hrnetv2_representation_head_forward.1} parent=31 // pred_region
        %s268 = smul.u32 2, %s21
        %p269 = scmp.lt.s32.totalorder %s20, 1
        %s270 = scalar_select %p269, %s20, 1
        %p271 = scmp.lt.s32.totalorder %s268, 1
        %s272 = scalar_select %p271, %s268, 1
        %s273 = smul.addr %s270, 2
        %s274 = sadd.s32 %s272, %s273
        %s275 = smul.addr %s274, 4
        %s276 = scalar_lea.vmem %s1, %s275
        %s277 = smul.u32 2, %s21
      $region40: #{hrnetv2_representation_head_forward.1} parent=31 // pred_fallthru
        _
      // Predicated region
      $region41: #{hrnetv2_representation_head_forward.1} parent=31 // pred_check
        %p278 = pneg %p103
      $region42: #{hrnetv2_representation_head_forward.1} parent=31 // pred_check_branch
        %280 = sbr.rel (%p278) target = $region44
      $region43: #{hrnetv2_representation_head_forward.1} parent=31 // pred_region
        %s281 = smul.u32 2, %s21
        %p282 = scmp.lt.s32.totalorder %s20, 1
        %s283 = scalar_select %p282, %s20, 1
        %p284 = scmp.lt.s32.totalorder %s281, 1
        %s285 = scalar_select %p284, %s281, 1
        %s286 = smul.addr %s283, 4
        %s287 = sadd.s32 %s285, %s286
        %s288 = smul.addr %s287, 4
        %s289 = scalar_lea.vmem %s2, %s288
        %s290 = smul.u32 2, %s21
      $region44: #{hrnetv2_representation_head_forward.1} parent=31 // pred_fallthru
        _
    $region32: #{hrnetv2_representation_head_forward.1} parent=5 // pred_fallthru
      _
    %p291 = scmp.le.s32.totalorder 1, %s13
    %p292 = scmp.lt.s32.totalorder %s13, 3
    %p293 = pnand %p291, %p292
    %p294 = pneg %p293
    // Predicated region
    $region45: #{hrnetv2_representation_head_forward.1} parent=5 // pred_check
      _
    $region46: #{hrnetv2_representation_head_forward.1} parent=5 // pred_check_branch
      %296 = sbr.rel (%p293) target = $region48
    $region47: #{hrnetv2_representation_head_forward.1} parent=5 // pred_region
      %s297 = ssub.s32 %s13, 1
      %s298 = smul.u32 2, %s23
      %p299 = scmp.lt.s32.totalorder %s22, 1
      %s300 = scalar_select %p299, %s22, 1
      %p301 = scmp.lt.s32.totalorder %s298, 1
      %s302 = scalar_select %p301, %s298, 1
      %s303 = smul.addr %s300, 2
      %s304 = sadd.s32 %s302, %s303
      %s305 = smul.addr %s304, 4
      %s306 = scalar_lea.vmem %s0, %s305
      %p307 = pneg %p53
      %p308 = pneg %p50
      %s309 = smul.u32 2, %s23
      %p310 = scmp.lt.s32.totalorder %s22, 1
      %s311 = scalar_select %p310, %s22, 1
      %p312 = scmp.lt.s32.totalorder %s309, 1
      %s313 = scalar_select %p312, %s309, 1
      %s314 = smul.addr %s311, 2
      %s315 = sadd.s32 %s313, %s314
      %s316 = smul.addr %s315, 4
      %s317 = scalar_lea.vmem %s1, %s316
      %p318 = pneg %p81
      %p319 = pneg %p78
      %s320 = smul.u32 2, %s23
      %p321 = scmp.lt.s32.totalorder %s22, 1
      %s322 = scalar_select %p321, %s22, 1
      %p323 = scmp.lt.s32.totalorder %s320, 1
      %s324 = scalar_select %p323, %s320, 1
      %s325 = smul.addr %s322, 4
      %s326 = sadd.s32 %s324, %s325
      %s327 = smul.addr %s326, 4
      %s328 = scalar_lea.vmem %s2, %s327
      %p329 = pneg %p109
      %p330 = pneg %p106
      %p331 = pneg %p130
      %p332 = pneg %p127
      %p333 = pneg %p151
      %p334 = pneg %p148
      %p335 = pneg %p172
      %p336 = pneg %p169
      %p337 = pneg %p193
      %p338 = pneg %p190
      %p339 = pneg %p221
      %p340 = pneg %p218
      %s341 = smul.u32 2, %s23
      %p342 = scmp.lt.s32.totalorder %s22, 1
      %s343 = scalar_select %p342, %s22, 1
      %p344 = scmp.lt.s32.totalorder %s341, 1
      %s345 = scalar_select %p344, %s341, 1
      %s346 = smul.addr %s343, 4
      %s347 = sadd.s32 %s345, %s346
      %s348 = smul.addr %s347, 8
      %s349 = scalar_lea.vmem %s7, %s348
      %s350 = smul.u32 2, %s23
      %p351 = scmp.lt.s32.totalorder %s22, 1
      %s352 = scalar_select %p351, %s22, 1
      %p353 = scmp.lt.s32.totalorder %s350, 1
      %s354 = scalar_select %p353, %s350, 1
      %s355 = smul.addr %s352, 2
      %s356 = sadd.s32 %s354, %s355
      %s357 = smul.addr %s356, 4
      %s358 = scalar_lea.vmem %s0, %s357
      %s359 = smul.u32 2, %s23
      %s360 = smul.u32 2, %s23
      %p361 = scmp.lt.s32.totalorder %s22, 1
      %s362 = scalar_select %p361, %s22, 1
      %p363 = scmp.lt.s32.totalorder %s360, 1
      %s364 = scalar_select %p363, %s360, 1
      %s365 = smul.addr %s362, 2
      %s366 = sadd.s32 %s364, %s365
      %s367 = smul.addr %s366, 4
      %s368 = scalar_lea.vmem %s1, %s367
      %s369 = smul.u32 2, %s23
      %s370 = smul.u32 2, %s23
      %p371 = scmp.lt.s32.totalorder %s22, 1
      %s372 = scalar_select %p371, %s22, 1
      %p373 = scmp.lt.s32.totalorder %s370, 1
      %s374 = scalar_select %p373, %s370, 1
      %s375 = smul.addr %s372, 4
      %s376 = sadd.s32 %s374, %s375
      %s377 = smul.addr %s376, 4
      %s378 = scalar_lea.vmem %s2, %s377
      %s379 = smul.u32 2, %s23
      %s380 = smul.u32 2, %s23
      %p381 = scmp.lt.s32.totalorder %s22, 1
      %s382 = scalar_select %p381, %s22, 1
      %p383 = scmp.lt.s32.totalorder %s380, 1
      %s384 = scalar_select %p383, %s380, 1
      %s385 = smul.addr %s382, 4
      %s386 = sadd.s32 %s384, %s385
      %s387 = smul.addr %s386, 8
      %s388 = scalar_lea.vmem %s7, %s387
      %s389 = smul.u32 2, %s23
      %v391 = vld [vmem:[%s3] sm:$0xf]
      %v392 = vld [vmem:[%s3 + $0x4] sm:$0xf]
      %v393 = vld [vmem:[%s358] sm:$0xff]
      %v395 = vcombine.high %v393, %v393
      %v397 = vpack.c.bf16 %v393, %v393
      %v398 = vpack.c.bf16 %v395, %v395
      %v399 = vld [vmem:[%s4] sm:$0xf]
      %v400 = vld [vmem:[%s4 + $0x4] sm:$0xf]
      %v401 = vld [vmem:[%s368] sm:$0xff]
      %v404 = vunpack.c.l.b16 %v399
      %v405 = vunpack.c.l.b16 %v400
      %v406 = vpack.c.b16 %v405, %v404
      %v408 = vunpack.c.l.b16 %v401
      %v409 = vunpack.c.h.b16 %v401
      %v410 = vpack.c.b16 %v408, %v408
      %v411 = vpack.c.b16 %v409, %v409
      %vm412 = vcmask 64512
      %v414 = vsel %vm412, %v406, 0
      %vm416 = vcmask 1043456
      %v418 = vsel %vm416, %v410, 0
      %v421 = vsel %vm416, %v411, 0
      %423 = vmatprep.subr.bf16.mxu0 %v421
      %424 = vmatpush1.bf16.msra.mxu0 %v418
      %425 = vmatprep.subr.bf16.mxu0 0
      %426 = vmatpush1.bf16.msra.mxu0 0
      %427 = vmatprep.subr.bf16.mxu0 0
      %428 = vmatpush1.bf16.msra.mxu0 0
      %429 = vmatprep.subr.bf16.mxu0 0
      %430 = vmatpush1.bf16.msra.mxu0 0
      %431 = vmatprep.subr.bf16.mxu0 0
      %432 = vmatpush1.bf16.msra.mxu0 0
      %433 = vmatprep.subr.bf16.mxu0 0
      %434 = vmatpush1.bf16.msra.mxu0 0
      %435 = vmatprep.subr.bf16.mxu0 0
      %436 = vmatpush1.bf16.msra.mxu0 0
      %437 = vmatprep.subr.bf16.mxu0 0
      %438 = vmatpush1.bf16.msra.mxu0 0
      %439 = vmatprep.subr.bf16.mxu0 0
      %440 = vmatpush1.bf16.msra.mxu0 0
      %441 = vmatprep.subr.bf16.mxu0 0
      %442 = vmatpush1.bf16.msra.mxu0 0
      %443 = vmatprep.subr.bf16.mxu0 0
      %444 = vmatpush1.bf16.msra.mxu0 0
      %445 = vmatprep.subr.bf16.mxu0 0
      %446 = vmatpush1.bf16.msra.mxu0 0
      %447 = vmatprep.subr.bf16.mxu0 0
      %448 = vmatpush1.bf16.msra.mxu0 0
      %449 = vmatprep.subr.bf16.mxu0 0
      %450 = vmatpush1.bf16.msra.mxu0 0
      %451 = vmatprep.subr.bf16.mxu0 0
      %452 = vmatpush1.bf16.msra.mxu0 0
      %453 = vmatprep.subr.bf16.mxu0 0
      %454 = vmatpush1.bf16.msra.mxu0 0
      %455 = vmatprep.mubr.bf16.mxu0 0
      %456 = vmatmul.mubr.bf16.gmra.mrb[0].mxu0 %v414
      %v457 = vpop.f32.mrb[0].mxu0
      %v458 = vadd.f32 0.0, %v457
      %v459 = vpop.f32.mrb[0].mxu0
      %v460 = vadd.f32 0.0, %v459
      %v461 = vpop.f32.mrb[0].mxu0
      %v462 = vadd.f32 0.0, %v461
      %v463 = vpop.f32.mrb[0].mxu0
      %v464 = vadd.f32 0.0, %v463
      %465 = vdwg.mxu0
      %v468 = vunpack.c.l.b16 %v391
      %v469 = vunpack.c.l.b16 %v392
      %v470 = vpack.c.b16 %v469, %v468
      %vm471 = vcmask 31744
      %v473 = vsel %vm471, %v470, 0
      %vm475 = vcmask 1041408
      %v477 = vsel %vm475, %v397, 0
      %v480 = vsel %vm475, %v398, 0
      %482 = vmatprep.subr.bf16.mxu0 %v480
      %483 = vmatpush1.bf16.msra.mxu0 %v477
      %484 = vmatprep.subr.bf16.mxu0 0
      %485 = vmatpush1.bf16.msra.mxu0 0
      %486 = vmatprep.subr.bf16.mxu0 0
      %487 = vmatpush1.bf16.msra.mxu0 0
      %488 = vmatprep.subr.bf16.mxu0 0
      %489 = vmatpush1.bf16.msra.mxu0 0
      %490 = vmatprep.subr.bf16.mxu0 0
      %491 = vmatpush1.bf16.msra.mxu0 0
      %492 = vmatprep.subr.bf16.mxu0 0
      %493 = vmatpush1.bf16.msra.mxu0 0
      %494 = vmatprep.subr.bf16.mxu0 0
      %495 = vmatpush1.bf16.msra.mxu0 0
      %496 = vmatprep.subr.bf16.mxu0 0
      %497 = vmatpush1.bf16.msra.mxu0 0
      %498 = vmatprep.subr.bf16.mxu0 0
      %499 = vmatpush1.bf16.msra.mxu0 0
      %500 = vmatprep.subr.bf16.mxu0 0
      %501 = vmatpush1.bf16.msra.mxu0 0
      %502 = vmatprep.subr.bf16.mxu0 0
      %503 = vmatpush1.bf16.msra.mxu0 0
      %504 = vmatprep.subr.bf16.mxu0 0
      %505 = vmatpush1.bf16.msra.mxu0 0
      %506 = vmatprep.subr.bf16.mxu0 0
      %507 = vmatpush1.bf16.msra.mxu0 0
      %508 = vmatprep.subr.bf16.mxu0 0
      %509 = vmatpush1.bf16.msra.mxu0 0
      %510 = vmatprep.subr.bf16.mxu0 0
      %511 = vmatpush1.bf16.msra.mxu0 0
      %512 = vmatprep.subr.bf16.mxu0 0
      %513 = vmatpush1.bf16.msra.mxu0 0
      %514 = vmatprep.mubr.bf16.mxu0 0
      %515 = vmatmul.mubr.bf16.gmra.mrb[0].mxu0 %v473
      %v516 = vpop.f32.mrb[0].mxu0
      %v517 = vadd.f32 %v458, %v516
      %v518 = vpop.f32.mrb[0].mxu0
      %v519 = vadd.f32 %v460, %v518
      %v520 = vpop.f32.mrb[0].mxu0
      %v521 = vadd.f32 %v462, %v520
      %v522 = vpop.f32.mrb[0].mxu0
      %v523 = vadd.f32 %v464, %v522
      %524 = vdwg.mxu0
      %v525 = vld [vmem:[%s5] sm:$0xf]
      %v526 = vld [vmem:[%s5 + $0x4] sm:$0xf]
      %v527 = vld [vmem:[%s378] sm:$0xff]
      %v528 = vld [vmem:[%s378 + $0x8] sm:$0xff]
      %v531 = vunpack.c.l.b16 %v525
      %v532 = vunpack.c.l.b16 %v526
      %v533 = vpack.c.b16 %v532, %v531
      %v536 = vunpack.c.l.b16 %v527
      %v537 = vunpack.c.h.b16 %v527
      %v538 = vunpack.c.l.b16 %v528
      %v539 = vunpack.c.h.b16 %v528
      %v540 = vpack.c.b16 %v538, %v536
      %v541 = vpack.c.b16 %v539, %v537
      %vm544 = vcmask 130048
      %v546 = vsel %vm544, %v533, 0
      %548 = vmatprep.subr.bf16.mxu0 %v541
      %549 = vmatpush1.bf16.msra.mxu0 %v540
      %550 = vmatprep.subr.bf16.mxu0 0
      %551 = vmatpush1.bf16.msra.mxu0 0
      %552 = vmatprep.subr.bf16.mxu0 0
      %553 = vmatpush1.bf16.msra.mxu0 0
      %554 = vmatprep.subr.bf16.mxu0 0
      %555 = vmatpush1.bf16.msra.mxu0 0
      %556 = vmatprep.subr.bf16.mxu0 0
      %557 = vmatpush1.bf16.msra.mxu0 0
      %558 = vmatprep.subr.bf16.mxu0 0
      %559 = vmatpush1.bf16.msra.mxu0 0
      %560 = vmatprep.subr.bf16.mxu0 0
      %561 = vmatpush1.bf16.msra.mxu0 0
      %562 = vmatprep.subr.bf16.mxu0 0
      %563 = vmatpush1.bf16.msra.mxu0 0
      %564 = vmatprep.subr.bf16.mxu0 0
      %565 = vmatpush1.bf16.msra.mxu0 0
      %566 = vmatprep.subr.bf16.mxu0 0
      %567 = vmatpush1.bf16.msra.mxu0 0
      %568 = vmatprep.subr.bf16.mxu0 0
      %569 = vmatpush1.bf16.msra.mxu0 0
      %570 = vmatprep.subr.bf16.mxu0 0
      %571 = vmatpush1.bf16.msra.mxu0 0
      %572 = vmatprep.subr.bf16.mxu0 0
      %573 = vmatpush1.bf16.msra.mxu0 0
      %574 = vmatprep.subr.bf16.mxu0 0
      %575 = vmatpush1.bf16.msra.mxu0 0
      %576 = vmatprep.subr.bf16.mxu0 0
      %577 = vmatpush1.bf16.msra.mxu0 0
      %578 = vmatprep.subr.bf16.mxu0 0
      %579 = vmatpush1.bf16.msra.mxu0 0
      %580 = vmatprep.mubr.bf16.mxu0 0
      %581 = vmatmul.mubr.bf16.gmra.mrb[0].mxu0 %v546
      %v582 = vpop.f32.mrb[0].mxu0
      %v583 = vadd.f32 0.0, %v582
      %v584 = vpop.f32.mrb[0].mxu0
      %v585 = vadd.f32 0.0, %v584
      %v586 = vpop.f32.mrb[0].mxu0
      %v587 = vadd.f32 0.0, %v586
      %v588 = vpop.f32.mrb[0].mxu0
      %v589 = vadd.f32 0.0, %v588
      %590 = vdwg.mxu0
      %v591 = vadd.f32 %v517, %v583
      %v592 = vadd.f32 %v519, %v585
      %v593 = vadd.f32 %v521, %v587
      %v594 = vadd.f32 %v523, %v589
      %v595 = vld [vmem:[%s6] sm:$0xff]
      %v596 = vld [vmem:[%s6 + $0x8] sm:$0xff]
      %598 = vset.pattern.permute.xlu0 0
      %599 = vperm.xlu0 %598, %v595
      %v600 = vpop.permute.xlu0 %599
      %603 = vset.pattern.permute.xlu0 0
      %604 = vperm.xlu0 %603, %v596
      %v605 = vpop.permute.xlu0 %604
      %v607 = vadd.f32 %v591, %v600
      %v608 = vadd.f32 %v592, %v600
      %v609 = vadd.f32 %v593, %v605
      %v610 = vadd.f32 %v594, %v605
      %611 = vst [vmem:[%s388] sm:$0xff] %v607
      %612 = vst [vmem:[%s388 + $0x8] sm:$0xff] %v608
      %613 = vst [vmem:[%s388 + $0x10] sm:$0xff] %v609
      %614 = vst [vmem:[%s388 + $0x18] sm:$0xff] %v610
      %s615 = smul.u32 2, %s23
      %p616 = scmp.lt.s32.totalorder %s22, 1
      %s617 = scalar_select %p616, %s22, 1
      %p618 = scmp.lt.s32.totalorder %s615, 1
      %s619 = scalar_select %p618, %s615, 1
      %s620 = smul.addr %s617, 4
      %s621 = sadd.s32 %s619, %s620
      %s622 = smul.addr %s621, 8
      %s623 = scalar_lea.vmem %s7, %s622
      // Predicated region
      $region49: #{hrnetv2_representation_head_forward.1} parent=47 // pred_check
        %p624 = pneg %p218
      $region50: #{hrnetv2_representation_head_forward.1} parent=47 // pred_check_branch
        %626 = sbr.rel (%p624) target = $region52
      $region51: #{hrnetv2_representation_head_forward.1} parent=47 // pred_region
        %s627 = smul.u32 2, %s23
      $region52: #{hrnetv2_representation_head_forward.1} parent=47 // pred_fallthru
        _
    $region48: #{hrnetv2_representation_head_forward.1} parent=5 // pred_fallthru
      _
    %p628 = scmp.le.s32.totalorder 2, %s13
    // Predicated region
    $region53: #{hrnetv2_representation_head_forward.1} parent=5 // pred_check
      %p629 = pneg %p628
    $region54: #{hrnetv2_representation_head_forward.1} parent=5 // pred_check_branch
      %631 = sbr.rel (%p629) target = $region56
    $region55: #{hrnetv2_representation_head_forward.1} parent=5 // pred_region
      %s632 = ssub.s32 %s13, 2
      // Predicated region
      $region57: #{hrnetv2_representation_head_forward.1} parent=55 // pred_check
        %p633 = pneg %p224
      $region58: #{hrnetv2_representation_head_forward.1} parent=55 // pred_check_branch
        %635 = sbr.rel (%p633) target = $region60
      $region59: #{hrnetv2_representation_head_forward.1} parent=55 // pred_region
        %s636 = smul.u32 2, %s25
        %p637 = scmp.lt.s32.totalorder %s24, 1
        %s638 = scalar_select %p637, %s24, 1
        %p639 = scmp.lt.s32.totalorder %s636, 1
        %s640 = scalar_select %p639, %s636, 1
        %s641 = smul.addr %s638, 4
        %s642 = sadd.s32 %s640, %s641
        %s643 = smul.addr %s642, 8
        %s644 = scalar_lea.vmem %s7, %s643
      $region60: #{hrnetv2_representation_head_forward.1} parent=55 // pred_fallthru
        _
    $region56: #{hrnetv2_representation_head_forward.1} parent=5 // pred_fallthru
      _
  $region6: #{hrnetv2_representation_head_forward.1} parent=0 // loop_footer
    %s17 = sadd.s32 1, %s13
  $region7: #{hrnetv2_representation_head_forward.1} parent=0 // loop_footer_branch
    %12 = sbr.rel target = $region3
  $region8: #{hrnetv2_representation_head_forward.1} parent=0 // loop_exit
    _

// kernel: hrnetv2_representation_head_forward.1
$region0: #{hrnetv2_representation_head_forward.1}
  #allocation0 [shape = 'u32[]', space=smem, size = 0x4, offset = 0x4, fixed_abs, tag = 'smem constant byte address 0x4 - core index']
  #allocation1 [shape = 'u32[144,128]{1,0:T(1,128)}', space=vmem, size = 0x12000, scoped, tag = 'internal scratch']
  %s0 = inlined_call_operand.vmem [shape: f32[2,4,256], index: 0, kind: input, shape index: {}]
  %s1 = inlined_call_operand.vmem [shape: bf16[2,8,256], index: 1, kind: input, shape index: {}]
  %s2 = inlined_call_operand.vmem [shape: bf16[2,16,256], index: 2, kind: input, shape index: {}]
  %s3 = inlined_call_operand.vmem [shape: bf16[16,4], index: 3, kind: input, shape index: {}]
  %s4 = inlined_call_operand.vmem [shape: bf16[16,8], index: 4, kind: input, shape index: {}]
  %s5 = inlined_call_operand.vmem [shape: bf16[16,16], index: 5, kind: input, shape index: {}]
  %s6 = inlined_call_operand.vmem [shape: f32[16,1], index: 6, kind: input, shape index: {}]
  %s7 = inlined_call_operand.vmem [shape: f32[2,16,256], index: 7, kind: output, shape index: {}]
  %s8 = sld [smem:[#allocation0]]
  $region61: #{hrnetv2_representation_head_forward.1} parent=0
    _
  %s10 = ssub.s32 1, %s8
  %s11 = scalar_select 0, %s10, %s8
  loop: start=0, step=1, limit=4
  $region2: #{hrnetv2_representation_head_forward.1} parent=0 // loop_pre_header
    _
  $region3: #{hrnetv2_representation_head_forward.1} parent=0 // loop_header
    %s13 = sphi 0, %s17
    %p14 = scmp.ge.s32.totalorder %s13, 4
    %s20 = sphi 0, %s32
    %s21 = sphi 0, %s28
    %s22 = sphi 0, %s20
    %s23 = sphi 0, %s21
    %s24 = sphi 0, %s22
    %s25 = sphi 0, %s23
    %s37 = sphi 0, %s39
    %s40 = sphi 0, %s37
    %s41 = sphi 0, %s40
    %s57 = sphi 0, %s41
    %s65 = sphi 0, %s67
    %s68 = sphi 0, %s65
    %s69 = sphi 0, %s68
    %s85 = sphi 0, %s69
    %s93 = sphi 0, %s95
    %s96 = sphi 0, %s93
    %s97 = sphi 0, %s96
    %s113 = sphi 0, %s97
    %s117 = sphi 0, %s117
    %s119 = sphi 0, %s117
    %s120 = sphi 0, %s119
    %s134 = sphi 0, %s120
    %s138 = sphi 0, %s138
    %s140 = sphi 0, %s138
    %s141 = sphi 0, %s140
    %s155 = sphi 0, %s141
    %s159 = sphi 0, %s159
    %s161 = sphi 0, %s159
    %s162 = sphi 0, %s161
    %s176 = sphi 0, %s162
    %s180 = sphi 0, %s180
    %s182 = sphi 0, %s180
    %s183 = sphi 0, %s182
    %s197 = sphi 0, %s183
    %s205 = sphi 0, %s207
    %s208 = sphi 0, %s205
    %s209 = sphi 0, %s208
    %s225 = sphi 0, %s209
  $region4: #{hrnetv2_representation_head_forward.1} parent=0 // loop_header_branch
    %16 = sbr.rel (%p14) target = $region8
  $region5: #{hrnetv2_representation_head_forward.1} parent=0 // loop_body
    %s18 = ssub.s32 %s13, 1
    %s19 = ssub.s32 %s13, 2
    %s26 = sadd.s32 1, %s21
    %p27 = scmp.ge.s32.totalorder %s26, 1
    %s28 = scalar_select %p27, 0, %s26
    %s29 = sadd.s32 1, %s20
    %s30 = scalar_select %p27, %s29, %s20
    %p31 = scmp.ge.s32.totalorder %s30, 2
    %s32 = scalar_select %p31, 0, %s30
    %s33 = ssub.s32 %s20, %s32
    %s34 = ssub.s32 %s21, %s28
    %s35 = sor.u32 %s33, %s34
    %p36 = scmp.eq.s32.totalorder %s35, 0
    %s38 = sadd.s32 %s37, 1
    %s39 = scalar_select %p36, %s37, %s38
    %p42 = pneg %p36
    %p43 = scmp.eq.s32.totalorder %s13, 1
    %p44 = por %p42, %p43
    %p45 = scmp.ne.s32.totalorder %s37, %s40
    %p46 = scmp.eq.s32.totalorder %s13, 0
    %p47 = por %p45, %p46
    %p48 = scmp.ne.s32.totalorder %s37, %s40
    %p49 = scmp.eq.s32.totalorder %s18, 1
    %p50 = por %p48, %p49
    %p51 = scmp.ne.s32.totalorder %s40, %s41
    %p52 = scmp.eq.s32.totalorder %s18, 0
    %p53 = por %p51, %p52
    %p54 = scmp.ne.s32.totalorder %s40, %s41
    %p55 = scmp.eq.s32.totalorder %s19, 1
    %p56 = por %p54, %p55
    %p58 = scmp.ne.s32.totalorder %s41, %s57
    %p59 = scmp.eq.s32.totalorder %s19, 0
    %p60 = por %p58, %p59
    %s61 = ssub.s32 %s20, %s32
    %s62 = ssub.s32 %s21, %s28
    %s63 = sor.u32 %s61, %s62
    %p64 = scmp.eq.s32.totalorder %s63, 0
    %s66 = sadd.s32 %s65, 1
    %s67 = scalar_select %p64, %s65, %s66
    %p70 = pneg %p64
    %p71 = scmp.eq.s32.totalorder %s13, 1
    %p72 = por %p70, %p71
    %p73 = scmp.ne.s32.totalorder %s65, %s68
    %p74 = scmp.eq.s32.totalorder %s13, 0
    %p75 = por %p73, %p74
    %p76 = scmp.ne.s32.totalorder %s65, %s68
    %p77 = scmp.eq.s32.totalorder %s18, 1
    %p78 = por %p76, %p77
    %p79 = scmp.ne.s32.totalorder %s68, %s69
    %p80 = scmp.eq.s32.totalorder %s18, 0
    %p81 = por %p79, %p80
    %p82 = scmp.ne.s32.totalorder %s68, %s69
    %p83 = scmp.eq.s32.totalorder %s19, 1
    %p84 = por %p82, %p83
    %p86 = scmp.ne.s32.totalorder %s69, %s85
    %p87 = scmp.eq.s32.totalorder %s19, 0
    %p88 = por %p86, %p87
    %s89 = ssub.s32 %s20, %s32
    %s90 = ssub.s32 %s21, %s28
    %s91 = sor.u32 %s89, %s90
    %p92 = scmp.eq.s32.totalorder %s91, 0
    %s94 = sadd.s32 %s93, 1
    %s95 = scalar_select %p92, %s93, %s94
    %p98 = pneg %p92
    %p99 = scmp.eq.s32.totalorder %s13, 1
    %p100 = por %p98, %p99
    %p101 = scmp.ne.s32.totalorder %s93, %s96
    %p102 = scmp.eq.s32.totalorder %s13, 0
    %p103 = por %p101, %p102
    %p104 = scmp.ne.s32.totalorder %s93, %s96
    %p105 = scmp.eq.s32.totalorder %s18, 1
    %p106 = por %p104, %p105
    %p107 = scmp.ne.s32.totalorder %s96, %s97
    %p108 = scmp.eq.s32.totalorder %s18, 0
    %p109 = por %p107, %p108
    %p110 = scmp.ne.s32.totalorder %s96, %s97
    %p111 = scmp.eq.s32.totalorder %s19, 1
    %p112 = por %p110, %p111
    %p114 = scmp.ne.s32.totalorder %s97, %s113
    %p115 = scmp.eq.s32.totalorder %s19, 0
    %p116 = por %p114, %p115
    %s118 = sadd.s32 %s117, 1
    %p121 = scmp.eq.s32.totalorder %s13, 1
    %p122 = scmp.ne.s32.totalorder %s117, %s119
    %p123 = scmp.eq.s32.totalorder %s13, 0
    %p124 = por %p122, %p123
    %p125 = scmp.ne.s32.totalorder %s117, %s119
    %p126 = scmp.eq.s32.totalorder %s18, 1
    %p127 = por %p125, %p126
    %p128 = scmp.ne.s32.totalorder %s119, %s120
    %p129 = scmp.eq.s32.totalorder %s18, 0
    %p130 = por %p128, %p129
    %p131 = scmp.ne.s32.totalorder %s119, %s120
    %p132 = scmp.eq.s32.totalorder %s19, 1
    %p133 = por %p131, %p132
    %p135 = scmp.ne.s32.totalorder %s120, %s134
    %p136 = scmp.eq.s32.totalorder %s19, 0
    %p137 = por %p135, %p136
    %s139 = sadd.s32 %s138, 1
    %p142 = scmp.eq.s32.totalorder %s13, 1
    %p143 = scmp.ne.s32.totalorder %s138, %s140
    %p144 = scmp.eq.s32.totalorder %s13, 0
    %p145 = por %p143, %p144
    %p146 = scmp.ne.s32.totalorder %s138, %s140
    %p147 = scmp.eq.s32.totalorder %s18, 1
    %p148 = por %p146, %p147
    %p149 = scmp.ne.s32.totalorder %s140, %s141
    %p150 = scmp.eq.s32.totalorder %s18, 0
    %p151 = por %p149, %p150
    %p152 = scmp.ne.s32.totalorder %s140, %s141
    %p153 = scmp.eq.s32.totalorder %s19, 1
    %p154 = por %p152, %p153
    %p156 = scmp.ne.s32.totalorder %s141, %s155
    %p157 = scmp.eq.s32.totalorder %s19, 0
    %p158 = por %p156, %p157
    %s160 = sadd.s32 %s159, 1
    %p163 = scmp.eq.s32.totalorder %s13, 1
    %p164 = scmp.ne.s32.totalorder %s159, %s161
    %p165 = scmp.eq.s32.totalorder %s13, 0
    %p166 = por %p164, %p165
    %p167 = scmp.ne.s32.totalorder %s159, %s161
    %p168 = scmp.eq.s32.totalorder %s18, 1
    %p169 = por %p167, %p168
    %p170 = scmp.ne.s32.totalorder %s161, %s162
    %p171 = scmp.eq.s32.totalorder %s18, 0
    %p172 = por %p170, %p171
    %p173 = scmp.ne.s32.totalorder %s161, %s162
    %p174 = scmp.eq.s32.totalorder %s19, 1
    %p175 = por %p173, %p174
    %p177 = scmp.ne.s32.totalorder %s162, %s176
    %p178 = scmp.eq.s32.totalorder %s19, 0
    %p179 = por %p177, %p178
    %s181 = sadd.s32 %s180, 1
    %p184 = scmp.eq.s32.totalorder %s13, 1
    %p185 = scmp.ne.s32.totalorder %s180, %s182
    %p186 = scmp.eq.s32.totalorder %s13, 0
    %p187 = por %p185, %p186
    %p188 = scmp.ne.s32.totalorder %s180, %s182
    %p189 = scmp.eq.s32.totalorder %s18, 1
    %p190 = por %p188, %p189
    %p191 = scmp.ne.s32.totalorder %s182, %s183
    %p192 = scmp.eq.s32.totalorder %s18, 0
    %p193 = por %p191, %p192
    %p194 = scmp.ne.s32.totalorder %s182, %s183
    %p195 = scmp.eq.s32.totalorder %s19, 1
    %p196 = por %p194, %p195
    %p198 = scmp.ne.s32.totalorder %s183, %s197
    %p199 = scmp.eq.s32.totalorder %s19, 0
    %p200 = por %p198, %p199
    %s201 = ssub.s32 %s20, %s32
    %s202 = ssub.s32 %s21, %s28
    %s203 = sor.u32 %s201, %s202
    %p204 = scmp.eq.s32.totalorder %s203, 0
    %s206 = sadd.s32 %s205, 1
    %s207 = scalar_select %p204, %s205, %s206
    %p210 = pneg %p204
    %p211 = scmp.eq.s32.totalorder %s13, 1
    %p212 = por %p210, %p211
    %p213 = scmp.ne.s32.totalorder %s205, %s208
    %p214 = scmp.eq.s32.totalorder %s13, 0
    %p215 = por %p213, %p214
    %p216 = scmp.ne.s32.totalorder %s205, %s208
    %p217 = scmp.eq.s32.totalorder %s18, 1
    %p218 = por %p216, %p217
    %p219 = scmp.ne.s32.totalorder %s208, %s209
    %p220 = scmp.eq.s32.totalorder %s18, 0
    %p221 = por %p219, %p220
    %p222 = scmp.ne.s32.totalorder %s208, %s209
    %p223 = scmp.eq.s32.totalorder %s19, 1
    %p224 = por %p222, %p223
    %p226 = scmp.ne.s32.totalorder %s209, %s225
    %p227 = scmp.eq.s32.totalorder %s19, 0
    %p228 = por %p226, %p227
    %p229 = scmp.le.s32.totalorder 1, %s13
    %p230 = scmp.lt.s32.totalorder %s13, 3
    %p231 = pnand %p229, %p230
    %p232 = pneg %p231
    // Predicated region
    $region9: #{hrnetv2_representation_head_forward.1} parent=5 // pred_check
      _
    $region10: #{hrnetv2_representation_head_forward.1} parent=5 // pred_check_branch
      %234 = sbr.rel (%p231) target = $region12
    $region11: #{hrnetv2_representation_head_forward.1} parent=5 // pred_region
      %s235 = ssub.s32 %s13, 1
      // Predicated region
      $region13: #{hrnetv2_representation_head_forward.1} parent=11 // pred_check
        %p236 = pneg %p130
      $region14: #{hrnetv2_representation_head_forward.1} parent=11 // pred_check_branch
        %238 = sbr.rel (%p236) target = $region16
      $region15: #{hrnetv2_representation_head_forward.1} parent=11 // pred_region
        _
      $region16: #{hrnetv2_representation_head_forward.1} parent=11 // pred_fallthru
        _
      // Predicated region
      $region17: #{hrnetv2_representation_head_forward.1} parent=11 // pred_check
        %p239 = pneg %p151
      $region18: #{hrnetv2_representation_head_forward.1} parent=11 // pred_check_branch
        %241 = sbr.rel (%p239) target = $region20
      $region19: #{hrnetv2_representation_head_forward.1} parent=11 // pred_region
        _
      $region20: #{hrnetv2_representation_head_forward.1} parent=11 // pred_fallthru
        _
      // Predicated region
      $region21: #{hrnetv2_representation_head_forward.1} parent=11 // pred_check
        %p242 = pneg %p172
      $region22: #{hrnetv2_representation_head_forward.1} parent=11 // pred_check_branch
        %244 = sbr.rel (%p242) target = $region24
      $region23: #{hrnetv2_representation_head_forward.1} parent=11 // pred_region
        _
      $region24: #{hrnetv2_representation_head_forward.1} parent=11 // pred_fallthru
        _
      // Predicated region
      $region25: #{hrnetv2_representation_head_forward.1} parent=11 // pred_check
        %p245 = pneg %p193
      $region26: #{hrnetv2_representation_head_forward.1} parent=11 // pred_check_branch
        %247 = sbr.rel (%p245) target = $region28
      $region27: #{hrnetv2_representation_head_forward.1} parent=11 // pred_region
        _
      $region28: #{hrnetv2_representation_head_forward.1} parent=11 // pred_fallthru
        _
    $region12: #{hrnetv2_representation_head_forward.1} parent=5 // pred_fallthru
      _
    %p248 = scmp.lt.s32.totalorder %s13, 2
    // Predicated region
    $region29: #{hrnetv2_representation_head_forward.1} parent=5 // pred_check
      %p249 = pneg %p248
    $region30: #{hrnetv2_representation_head_forward.1} parent=5 // pred_check_branch
      %251 = sbr.rel (%p249) target = $region32
    $region31: #{hrnetv2_representation_head_forward.1} parent=5 // pred_region
      // Predicated region
      $region33: #{hrnetv2_representation_head_forward.1} parent=31 // pred_check
        %p252 = pneg %p47
      $region34: #{hrnetv2_representation_head_forward.1} parent=31 // pred_check_branch
        %254 = sbr.rel (%p252) target = $region36
      $region35: #{hrnetv2_representation_head_forward.1} parent=31 // pred_region
        %s255 = smul.u32 2, %s21
        %p256 = scmp.lt.s32.totalorder %s20, 1
        %s257 = scalar_select %p256, %s20, 1
        %p258 = scmp.lt.s32.totalorder %s255, 1
        %s259 = scalar_select %p258, %s255, 1
        %s260 = smul.addr %s257, 2
        %s261 = sadd.s32 %s259, %s260
        %s262 = smul.addr %s261, 4
        %s263 = scalar_lea.vmem %s0, %s262
        %s264 = smul.u32 2, %s21
      $region36: #{hrnetv2_representation_head_forward.1} parent=31 // pred_fallthru
        _
      // Predicated region
      $region37: #{hrnetv2_representation_head_forward.1} parent=31 // pred_check
        %p265 = pneg %p75
      $region38: #{hrnetv2_representation_head_forward.1} parent=31 // pred_check_branch
        %267 = sbr.rel (%p265) target = $region40
      $region39: #{hrnetv2_representation_head_forward.1} parent=31 // pred_region
        %s268 = smul.u32 2, %s21
        %p269 = scmp.lt.s32.totalorder %s20, 1
        %s270 = scalar_select %p269, %s20, 1
        %p271 = scmp.lt.s32.totalorder %s268, 1
        %s272 = scalar_select %p271, %s268, 1
        %s273 = smul.addr %s270, 2
        %s274 = sadd.s32 %s272, %s273
        %s275 = smul.addr %s274, 4
        %s276 = scalar_lea.vmem %s1, %s275
        %s277 = smul.u32 2, %s21
      $region40: #{hrnetv2_representation_head_forward.1} parent=31 // pred_fallthru
        _
      // Predicated region
      $region41: #{hrnetv2_representation_head_forward.1} parent=31 // pred_check
        %p278 = pneg %p103
      $region42: #{hrnetv2_representation_head_forward.1} parent=31 // pred_check_branch
        %280 = sbr.rel (%p278) target = $region44
      $region43: #{hrnetv2_representation_head_forward.1} parent=31 // pred_region
        %s281 = smul.u32 2, %s21
        %p282 = scmp.lt.s32.totalorder %s20, 1
        %s283 = scalar_select %p282, %s20, 1
        %p284 = scmp.lt.s32.totalorder %s281, 1
        %s285 = scalar_select %p284, %s281, 1
        %s286 = smul.addr %s283, 4
        %s287 = sadd.s32 %s285, %s286
        %s288 = smul.addr %s287, 4
        %s289 = scalar_lea.vmem %s2, %s288
        %s290 = smul.u32 2, %s21
      $region44: #{hrnetv2_representation_head_forward.1} parent=31 // pred_fallthru
        _
    $region32: #{hrnetv2_representation_head_forward.1} parent=5 // pred_fallthru
      _
    %p291 = scmp.le.s32.totalorder 1, %s13
    %p292 = scmp.lt.s32.totalorder %s13, 3
    %p293 = pnand %p291, %p292
    %p294 = pneg %p293
    // Predicated region
    $region45: #{hrnetv2_representation_head_forward.1} parent=5 // pred_check
      _
    $region46: #{hrnetv2_representation_head_forward.1} parent=5 // pred_check_branch
      %296 = sbr.rel (%p293) target = $region48
    $region47: #{hrnetv2_representation_head_forward.1} parent=5 // pred_region
      %s297 = ssub.s32 %s13, 1
      %s298 = smul.u32 2, %s23
      %p299 = scmp.lt.s32.totalorder %s22, 1
      %s300 = scalar_select %p299, %s22, 1
      %p301 = scmp.lt.s32.totalorder %s298, 1
      %s302 = scalar_select %p301, %s298, 1
      %s303 = smul.addr %s300, 2
      %s304 = sadd.s32 %s302, %s303
      %s305 = smul.addr %s304, 4
      %s306 = scalar_lea.vmem %s0, %s305
      %p307 = pneg %p53
      %p308 = pneg %p50
      %s309 = smul.u32 2, %s23
      %p310 = scmp.lt.s32.totalorder %s22, 1
      %s311 = scalar_select %p310, %s22, 1
      %p312 = scmp.lt.s32.totalorder %s309, 1
      %s313 = scalar_select %p312, %s309, 1
      %s314 = smul.addr %s311, 2
      %s315 = sadd.s32 %s313, %s314
      %s316 = smul.addr %s315, 4
      %s317 = scalar_lea.vmem %s1, %s316
      %p318 = pneg %p81
      %p319 = pneg %p78
      %s320 = smul.u32 2, %s23
      %p321 = scmp.lt.s32.totalorder %s22, 1
      %s322 = scalar_select %p321, %s22, 1
      %p323 = scmp.lt.s32.totalorder %s320, 1
      %s324 = scalar_select %p323, %s320, 1
      %s325 = smul.addr %s322, 4
      %s326 = sadd.s32 %s324, %s325
      %s327 = smul.addr %s326, 4
      %s328 = scalar_lea.vmem %s2, %s327
      %p329 = pneg %p109
      %p330 = pneg %p106
      %p331 = pneg %p130
      %p332 = pneg %p127
      %p333 = pneg %p151
      %p334 = pneg %p148
      %p335 = pneg %p172
      %p336 = pneg %p169
      %p337 = pneg %p193
      %p338 = pneg %p190
      %p339 = pneg %p221
      %p340 = pneg %p218
      %s341 = smul.u32 2, %s23
      %p342 = scmp.lt.s32.totalorder %s22, 1
      %s343 = scalar_select %p342, %s22, 1
      %p344 = scmp.lt.s32.totalorder %s341, 1
      %s345 = scalar_select %p344, %s341, 1
      %s346 = smul.addr %s343, 4
      %s347 = sadd.s32 %s345, %s346
      %s348 = smul.addr %s347, 8
      %s349 = scalar_lea.vmem %s7, %s348
      %s350 = smul.u32 2, %s23
      %p351 = scmp.lt.s32.totalorder %s22, 1
      %s352 = scalar_select %p351, %s22, 1
      %p353 = scmp.lt.s32.totalorder %s350, 1
      %s354 = scalar_select %p353, %s350, 1
      %s355 = smul.addr %s352, 2
      %s356 = sadd.s32 %s354, %s355
      %s357 = smul.addr %s356, 4
      %s358 = scalar_lea.vmem %s0, %s357
      %s359 = smul.u32 2, %s23
      %s360 = smul.u32 2, %s23
      %p361 = scmp.lt.s32.totalorder %s22, 1
      %s362 = scalar_select %p361, %s22, 1
      %p363 = scmp.lt.s32.totalorder %s360, 1
      %s364 = scalar_select %p363, %s360, 1
      %s365 = smul.addr %s362, 2
      %s366 = sadd.s32 %s364, %s365
      %s367 = smul.addr %s366, 4
      %s368 = scalar_lea.vmem %s1, %s367
      %s369 = smul.u32 2, %s23
      %s370 = smul.u32 2, %s23
      %p371 = scmp.lt.s32.totalorder %s22, 1
      %s372 = scalar_select %p371, %s22, 1
      %p373 = scmp.lt.s32.totalorder %s370, 1
      %s374 = scalar_select %p373, %s370, 1
      %s375 = smul.addr %s372, 4
      %s376 = sadd.s32 %s374, %s375
      %s377 = smul.addr %s376, 4
      %s378 = scalar_lea.vmem %s2, %s377
      %s379 = smul.u32 2, %s23
      %s380 = smul.u32 2, %s23
      %p381 = scmp.lt.s32.totalorder %s22, 1
      %s382 = scalar_select %p381, %s22, 1
      %p383 = scmp.lt.s32.totalorder %s380, 1
      %s384 = scalar_select %p383, %s380, 1
      %s385 = smul.addr %s382, 4
      %s386 = sadd.s32 %s384, %s385
      %s387 = smul.addr %s386, 8
      %s388 = scalar_lea.vmem %s7, %s387
      %s389 = smul.u32 2, %s23
      %v391 = vld [vmem:[%s3] sm:$0xf]
      %v392 = vld [vmem:[%s3 + $0x4] sm:$0xf]
      %v393 = vld [vmem:[%s358] sm:$0xff]
      %v395 = vcombine.high %v393, %v393
      %v397 = vpack.c.bf16 %v393, %v393
      %v398 = vpack.c.bf16 %v395, %v395
      %v399 = vld [vmem:[%s4] sm:$0xf]
      %v400 = vld [vmem:[%s4 + $0x4] sm:$0xf]
      %v401 = vld [vmem:[%s368] sm:$0xff]
      %v404 = vunpack.c.l.b16 %v399
      %v405 = vunpack.c.l.b16 %v400
      %v406 = vpack.c.b16 %v405, %v404
      %v408 = vunpack.c.l.b16 %v401
      %v409 = vunpack.c.h.b16 %v401
      %v410 = vpack.c.b16 %v408, %v408
      %v411 = vpack.c.b16 %v409, %v409
      %vm412 = vcmask 64512
      %v414 = vsel %vm412, %v406, 0
      %vm416 = vcmask 1043456
      %v418 = vsel %vm416, %v410, 0
      %v421 = vsel %vm416, %v411, 0
      %423 = vmatprep.subr.bf16.mxu0 %v421
      %424 = vmatpush1.bf16.msra.mxu0 %v418
      %425 = vmatprep.subr.bf16.mxu0 0
      %426 = vmatpush1.bf16.msra.mxu0 0
      %427 = vmatprep.subr.bf16.mxu0 0
      %428 = vmatpush1.bf16.msra.mxu0 0
      %429 = vmatprep.subr.bf16.mxu0 0
      %430 = vmatpush1.bf16.msra.mxu0 0
      %431 = vmatprep.subr.bf16.mxu0 0
      %432 = vmatpush1.bf16.msra.mxu0 0
      %433 = vmatprep.subr.bf16.mxu0 0
      %434 = vmatpush1.bf16.msra.mxu0 0
      %435 = vmatprep.subr.bf16.mxu0 0
      %436 = vmatpush1.bf16.msra.mxu0 0
      %437 = vmatprep.subr.bf16.mxu0 0
      %438 = vmatpush1.bf16.msra.mxu0 0
      %439 = vmatprep.subr.bf16.mxu0 0
      %440 = vmatpush1.bf16.msra.mxu0 0
      %441 = vmatprep.subr.bf16.mxu0 0
      %442 = vmatpush1.bf16.msra.mxu0 0
      %443 = vmatprep.subr.bf16.mxu0 0
      %444 = vmatpush1.bf16.msra.mxu0 0
      %445 = vmatprep.subr.bf16.mxu0 0
      %446 = vmatpush1.bf16.msra.mxu0 0
      %447 = vmatprep.subr.bf16.mxu0 0
      %448 = vmatpush1.bf16.msra.mxu0 0
      %449 = vmatprep.subr.bf16.mxu0 0
      %450 = vmatpush1.bf16.msra.mxu0 0
      %451 = vmatprep.subr.bf16.mxu0 0
      %452 = vmatpush1.bf16.msra.mxu0 0
      %453 = vmatprep.subr.bf16.mxu0 0
      %454 = vmatpush1.bf16.msra.mxu0 0
      %455 = vmatprep.mubr.bf16.mxu0 0
      %456 = vmatmul.mubr.bf16.gmra.mrb[0].mxu0 %v414
      %v457 = vpop.f32.mrb[0].mxu0
      %v458 = vadd.f32 0.0, %v457
      %v459 = vpop.f32.mrb[0].mxu0
      %v460 = vadd.f32 0.0, %v459
      %v461 = vpop.f32.mrb[0].mxu0
      %v462 = vadd.f32 0.0, %v461
      %v463 = vpop.f32.mrb[0].mxu0
      %v464 = vadd.f32 0.0, %v463
      %465 = vdwg.mxu0
      %v468 = vunpack.c.l.b16 %v391
      %v469 = vunpack.c.l.b16 %v392
      %v470 = vpack.c.b16 %v469, %v468
      %vm471 = vcmask 31744
      %v473 = vsel %vm471, %v470, 0
      %vm475 = vcmask 1041408
      %v477 = vsel %vm475, %v397, 0
      %v480 = vsel %vm475, %v398, 0
      %482 = vmatprep.subr.bf16.mxu0 %v480
      %483 = vmatpush1.bf16.msra.mxu0 %v477
      %484 = vmatprep.subr.bf16.mxu0 0
      %485 = vmatpush1.bf16.msra.mxu0 0
      %486 = vmatprep.subr.bf16.mxu0 0
      %487 = vmatpush1.bf16.msra.mxu0 0
      %488 = vmatprep.subr.bf16.mxu0 0
      %489 = vmatpush1.bf16.msra.mxu0 0
      %490 = vmatprep.subr.bf16.mxu0 0
      %491 = vmatpush1.bf16.msra.mxu0 0
      %492 = vmatprep.subr.bf16.mxu0 0
      %493 = vmatpush1.bf16.msra.mxu0 0
      %494 = vmatprep.subr.bf16.mxu0 0
      %495 = vmatpush1.bf16.msra.mxu0 0
      %496 = vmatprep.subr.bf16.mxu0 0
      %497 = vmatpush1.bf16.msra.mxu0 0
      %498 = vmatprep.subr.bf16.mxu0 0
      %499 = vmatpush1.bf16.msra.mxu0 0
      %500 = vmatprep.subr.bf16.mxu0 0
      %501 = vmatpush1.bf16.msra.mxu0 0
      %502 = vmatprep.subr.bf16.mxu0 0
      %503 = vmatpush1.bf16.msra.mxu0 0
      %504 = vmatprep.subr.bf16.mxu0 0
      %505 = vmatpush1.bf16.msra.mxu0 0
      %506 = vmatprep.subr.bf16.mxu0 0
      %507 = vmatpush1.bf16.msra.mxu0 0
      %508 = vmatprep.subr.bf16.mxu0 0
      %509 = vmatpush1.bf16.msra.mxu0 0
      %510 = vmatprep.subr.bf16.mxu0 0
      %511 = vmatpush1.bf16.msra.mxu0 0
      %512 = vmatprep.subr.bf16.mxu0 0
      %513 = vmatpush1.bf16.msra.mxu0 0
      %514 = vmatprep.mubr.bf16.mxu0 0
      %515 = vmatmul.mubr.bf16.gmra.mrb[0].mxu0 %v473
      %v516 = vpop.f32.mrb[0].mxu0
      %v517 = vadd.f32 %v458, %v516
      %v518 = vpop.f32.mrb[0].mxu0
      %v519 = vadd.f32 %v460, %v518
      %v520 = vpop.f32.mrb[0].mxu0
      %v521 = vadd.f32 %v462, %v520
      %v522 = vpop.f32.mrb[0].mxu0
      %v523 = vadd.f32 %v464, %v522
      %524 = vdwg.mxu0
      %v525 = vld [vmem:[%s5] sm:$0xf]
      %v526 = vld [vmem:[%s5 + $0x4] sm:$0xf]
      %v527 = vld [vmem:[%s378] sm:$0xff]
      %v528 = vld [vmem:[%s378 + $0x8] sm:$0xff]
      %v531 = vunpack.c.l.b16 %v525
      %v532 = vunpack.c.l.b16 %v526
      %v533 = vpack.c.b16 %v532, %v531
      %v536 = vunpack.c.l.b16 %v527
      %v537 = vunpack.c.h.b16 %v527
      %v538 = vunpack.c.l.b16 %v528
      %v539 = vunpack.c.h.b16 %v528
      %v540 = vpack.c.b16 %v538, %v536
      %v541 = vpack.c.b16 %v539, %v537
      %vm544 = vcmask 130048
      %v546 = vsel %vm544, %v533, 0
      %548 = vmatprep.subr.bf16.mxu0 %v541
      %549 = vmatpush1.bf16.msra.mxu0 %v540
      %550 = vmatprep.subr.bf16.mxu0 0
      %551 = vmatpush1.bf16.msra.mxu0 0
      %552 = vmatprep.subr.bf16.mxu0 0
      %553 = vmatpush1.bf16.msra.mxu0 0
      %554 = vmatprep.subr.bf16.mxu0 0
      %555 = vmatpush1.bf16.msra.mxu0 0
      %556 = vmatprep.subr.bf16.mxu0 0
      %557 = vmatpush1.bf16.msra.mxu0 0
      %558 = vmatprep.subr.bf16.mxu0 0
      %559 = vmatpush1.bf16.msra.mxu0 0
      %560 = vmatprep.subr.bf16.mxu0 0
      %561 = vmatpush1.bf16.msra.mxu0 0
      %562 = vmatprep.subr.bf16.mxu0 0
      %563 = vmatpush1.bf16.msra.mxu0 0
      %564 = vmatprep.subr.bf16.mxu0 0
      %565 = vmatpush1.bf16.msra.mxu0 0
      %566 = vmatprep.subr.bf16.mxu0 0
      %567 = vmatpush1.bf16.msra.mxu0 0
      %568 = vmatprep.subr.bf16.mxu0 0
      %569 = vmatpush1.bf16.msra.mxu0 0
      %570 = vmatprep.subr.bf16.mxu0 0
      %571 = vmatpush1.bf16.msra.mxu0 0
      %572 = vmatprep.subr.bf16.mxu0 0
      %573 = vmatpush1.bf16.msra.mxu0 0
      %574 = vmatprep.subr.bf16.mxu0 0
      %575 = vmatpush1.bf16.msra.mxu0 0
      %576 = vmatprep.subr.bf16.mxu0 0
      %577 = vmatpush1.bf16.msra.mxu0 0
      %578 = vmatprep.subr.bf16.mxu0 0
      %579 = vmatpush1.bf16.msra.mxu0 0
      %580 = vmatprep.mubr.bf16.mxu0 0
      %581 = vmatmul.mubr.bf16.gmra.mrb[0].mxu0 %v546
      %v582 = vpop.f32.mrb[0].mxu0
      %v583 = vadd.f32 0.0, %v582
      %v584 = vpop.f32.mrb[0].mxu0
      %v585 = vadd.f32 0.0, %v584
      %v586 = vpop.f32.mrb[0].mxu0
      %v587 = vadd.f32 0.0, %v586
      %v588 = vpop.f32.mrb[0].mxu0
      %v589 = vadd.f32 0.0, %v588
      %590 = vdwg.mxu0
      %v591 = vadd.f32 %v517, %v583
      %v592 = vadd.f32 %v519, %v585
      %v593 = vadd.f32 %v521, %v587
      %v594 = vadd.f32 %v523, %v589
      %v595 = vld [vmem:[%s6] sm:$0xff]
      %v596 = vld [vmem:[%s6 + $0x8] sm:$0xff]
      %598 = vset.pattern.permute.xlu0 0
      %599 = vperm.xlu0 %598, %v595
      %v600 = vpop.permute.xlu0 %599
      %603 = vset.pattern.permute.xlu0 0
      %604 = vperm.xlu0 %603, %v596
      %v605 = vpop.permute.xlu0 %604
      %v607 = vadd.f32 %v591, %v600
      %v608 = vadd.f32 %v592, %v600
      %v609 = vadd.f32 %v593, %v605
      %v610 = vadd.f32 %v594, %v605
      %611 = vst [vmem:[%s388] sm:$0xff] %v607
      %612 = vst [vmem:[%s388 + $0x8] sm:$0xff] %v608
      %613 = vst [vmem:[%s388 + $0x10] sm:$0xff] %v609
      %614 = vst [vmem:[%s388 + $0x18] sm:$0xff] %v610
      %s615 = smul.u32 2, %s23
      %p616 = scmp.lt.s32.totalorder %s22, 1
      %s617 = scalar_select %p616, %s22, 1
      %p618 = scmp.lt.s32.totalorder %s615, 1
      %s619 = scalar_select %p618, %s615, 1
      %s620 = smul.addr %s617, 4
      %s621 = sadd.s32 %s619, %s620
      %s622 = smul.addr %s621, 8
      %s623 = scalar_lea.vmem %s7, %s622
      // Predicated region
      $region49: #{hrnetv2_representation_head_forward.1} parent=47 // pred_check
        %p624 = pneg %p218
      $region50: #{hrnetv2_representation_head_forward.1} parent=47 // pred_check_branch
        %626 = sbr.rel (%p624) target = $region52
      $region51: #{hrnetv2_representation_head_forward.1} parent=47 // pred_region
        %s627 = smul.u32 2, %s23
      $region52: #{hrnetv2_representation_head_forward.1} parent=47 // pred_fallthru
        _
    $region48: #{hrnetv2_representation_head_forward.1} parent=5 // pred_fallthru
      _
    %p628 = scmp.le.s32.totalorder 2, %s13
    // Predicated region
    $region53: #{hrnetv2_representation_head_forward.1} parent=5 // pred_check
      %p629 = pneg %p628
    $region54: #{hrnetv2_representation_head_forward.1} parent=5 // pred_check_branch
      %631 = sbr.rel (%p629) target = $region56
    $region55: #{hrnetv2_representation_head_forward.1} parent=5 // pred_region
      %s632 = ssub.s32 %s13, 2
      // Predicated region
      $region57: #{hrnetv2_representation_head_forward.1} parent=55 // pred_check
        %p633 = pneg %p224
      $region58: #{hrnetv2_representation_head_forward.1} parent=55 // pred_check_branch
        %635 = sbr.rel (%p633) target = $region60
      $region59: #{hrnetv2_representation_head_forward.1} parent=55 // pred_region
        %s636 = smul.u32 2, %s25
        %p637 = scmp.lt.s32.totalorder %s24, 1
        %s638 = scalar_select %p637, %s24, 1
        %p639 = scmp.lt.s32.totalorder %s636, 1
        %s640 = scalar_select %p639, %s636, 1
        %s641 = smul.addr %s638, 4
        %s642 = sadd.s32 %s640, %s641
        %s643 = smul.addr %s642, 8
        %s644 = scalar_lea.vmem %s7, %s643
      $region60: #{hrnetv2_representation_head_forward.1} parent=55 // pred_fallthru
        _
    $region56: #{hrnetv2_representation_head_forward.1} parent=5 // pred_fallthru
      _
  $region6: #{hrnetv2_representation_head_forward.1} parent=0 // loop_footer
    %s17 = sadd.s32 1, %s13
  $region7: #{hrnetv2_representation_head_forward.1} parent=0 // loop_footer_branch
    %12 = sbr.rel target = $region3
  $region8: #{hrnetv2_representation_head_forward.1} parent=0 // loop_exit
    _

</llo_original>
